<compile_context>
chip_gen: v5e
topology: v5e:2x2
jax: 0.10.0
libtpu: 0.0.40
codegen_flags: <defaults>
</compile_context>

<pallas_src>
import functools

import jax
import jax.numpy as jnp
from jax import lax
from jax.experimental import pallas as pl
from jax.experimental.pallas import tpu as pltpu

# ---- module constants (from multietm.py) ----
EMSIZE = 768          # emsize / rho_size
NUM_TOPICS = 25
VOCAB_SIZE = 1611     # vocab_size2
BATCH = 8             # small batch for the demo

_LANES = 128
# >=512-lane chunks (review). v5e may prefer vocab_tile=896 (Vp=1792, 2 chunks)
# if the 1664->2048 padding tax outweighs the deeper pipeline; v7x is happy
# with few large chunks either way.
_VOCAB_TILE = 512


def _round_up(x, m):
    return (x + m - 1) // m * m


def etm_kernel(alphas_ref, rho_t_ref, theta_ref, bows_ref,
               preds_ref, recon_ref, logit_ref, *, vocab_size):
    j = pl.program_id(0)
    num_chunks, _, tv = logit_ref.shape      # static (scratch shape)

    # --- per-chunk work: MXU matmul #1, overlapped with the next rho_t DMA ---
    logit_ref[j] = jnp.dot(alphas_ref[...], rho_t_ref[...],
                           preferred_element_type=jnp.float32)       # [K, TV]

    # --- finalize on the last vocab chunk (full logit table is resident) ---
    @pl.when(j == num_chunks - 1)
    def _():
        # Global max over the vocab axis (two-pass softmax, no online rescale).
        m = jnp.max(logit_ref[0], axis=1, keepdims=True)              # [K, 1]
        for c in range(1, num_chunks):
            m = jnp.maximum(m, jnp.max(logit_ref[c], axis=1, keepdims=True))

        # Unnormalized softmax numerator. rho_t's zero-padded columns (all in
        # the last chunk, < TV of them) are masked after the exp so they do
        # not perturb the denominator.
        e_chunks = [jnp.exp(logit_ref[c] - m) for c in range(num_chunks)]
        valid_last = vocab_size - (num_chunks - 1) * tv
        if valid_last < tv:                                           # static
            col = lax.broadcasted_iota(jnp.int32, e_chunks[-1].shape, 1)
            e_chunks[-1] = jnp.where(col < valid_last, e_chunks[-1], 0.0)

        # Fold the softmax normalizer into theta (tiny [B, K] scale) instead
        # of scaling the full exp table:  theta_scaled @ e == theta @ beta.T
        denom = jnp.sum(e_chunks[0], axis=1)                          # [K]
        for c in range(1, num_chunks):
            denom = denom + jnp.sum(e_chunks[c], axis=1)
        inv = pl.reciprocal(denom, approx=False)                      # exact (feeds a log)
        theta_scaled = theta_ref[...] * inv[None, :]                  # [B, K]

        # Second matmul + log, chunk by chunk: each preds store is a static,
        # lane-dense [B, TV] write; recon accumulates against unpadded bows.
        recon = jnp.zeros((theta_ref.shape[0], 1), jnp.float32)       # [B, 1]
        for c in range(num_chunks):
            res_c = jnp.dot(theta_scaled, e_chunks[c],
                            preferred_element_type=jnp.float32)       # [B, TV]
            p_c = jnp.log(res_c + 1e-6)
            preds_ref[:, c * tv:(c + 1) * tv] = p_c
            lo, hi = c * tv, min((c + 1) * tv, vocab_size)
            if hi > lo:
                recon = recon + jnp.sum(p_c[:, :hi - lo] * bows_ref[:, lo:hi],
                                        axis=1, keepdims=True)
        recon_ref[...] = -recon


def prepare_decoder_weights(rho, vocab_tile=_VOCAB_TILE):
    """One-time prep: rho -> rho.T, zero-padded to a multiple of vocab_tile."""
    V, E = rho.shape
    assert vocab_tile % _LANES == 0
    v_pad = _round_up(V, vocab_tile)
    rho_t = jnp.zeros((E, v_pad), rho.dtype).at[:, :V].set(rho.T)
    return rho_t


def etm_hpo_decoder_forward(alphas, rho_t_padded, bows, normalized_bows,
                            theta, kl_theta, *, vocab_size, aggregate=True,
                            vocab_tile=_VOCAB_TILE):
    """Pallas equivalent of ETM_HPO_Decoder.forward (normalized_bows unused)."""
    del normalized_bows  # unused by the PyTorch forward as well
    B, K = theta.shape
    E, Vp = rho_t_padded.shape
    V = vocab_size
    assert alphas.shape == (K, E) and bows.shape == (B, V)
    assert Vp % vocab_tile == 0 and Vp >= V
    num_chunks = Vp // vocab_tile

    flops = 2 * K * E * Vp + 2 * B * K * Vp
    transcendentals = K * Vp + B * Vp + K
    bytes_accessed = 4 * (K * E + E * Vp + B * K + B * V + B * Vp + B)

    kernel = functools.partial(etm_kernel, vocab_size=V)
    preds_p, recon = pl.pallas_call(
        kernel,
        out_shape=(
            jax.ShapeDtypeStruct((B, Vp), jnp.float32),
            jax.ShapeDtypeStruct((B, 1), jnp.float32),
        ),
        grid_spec=pltpu.PrefetchScalarGridSpec(
            num_scalar_prefetch=0,
            grid=(num_chunks,),
            in_specs=[
                pl.BlockSpec((K, E), lambda j: (0, 0)),            # alphas (resident)
                pl.BlockSpec((E, vocab_tile), lambda j: (0, j)),   # rho_t (streamed)
                pl.BlockSpec((B, K), lambda j: (0, 0)),            # theta (resident)
                pl.BlockSpec((B, V), lambda j: (0, 0)),            # bows, unpadded (resident)
            ],
            out_specs=(
                pl.BlockSpec((B, Vp), lambda j: (0, 0)),           # preds (last-step write)
                pl.BlockSpec((B, 1), lambda j: (0, 0)),            # per-sample recon
            ),
            scratch_shapes=[pltpu.VMEM((num_chunks, K, vocab_tile), jnp.float32)],
        ),
        compiler_params=pltpu.CompilerParams(
            dimension_semantics=("arbitrary",)),                   # scratch/output carried
        cost_estimate=pl.CostEstimate(
            flops=flops,
            transcendentals=transcendentals,
            bytes_accessed=bytes_accessed,
        ),
    )(alphas, rho_t_padded, theta, bows)

    preds = preds_p[:, :V]
    recon_loss = recon[:, 0]
    if aggregate:
        recon_loss = jnp.mean(recon_loss)
    return recon_loss, kl_theta, preds


def _reference_forward(alphas, rho, theta, bows, kl_theta):
    logit = alphas @ rho.T
    beta = jax.nn.softmax(logit, axis=1).T            # [V, K]
    preds = jnp.log(theta @ beta.T + 1e-6)            # [B, V]
    recon = jnp.mean(-jnp.sum(preds * bows, axis=1))
    return recon, kl_theta, preds


if __name__ == "__main__":
    key = jax.random.PRNGKey(0)
    k_alpha, k_rho, k_theta, k_bows = jax.random.split(key, 4)

    # TODO(synk): the PyTorch __init__ builds rho from BioBERT pooler outputs
    # over the vocabulary; that tokenizer/BERT pass has no Pallas equivalent,
    # so a deterministic random rho with the module's fallback scale is used.
    alphas = jax.random.normal(k_alpha, (NUM_TOPICS, EMSIZE), dtype=jnp.float32) * 0.02
    rho = jax.random.normal(k_rho, (VOCAB_SIZE, EMSIZE), dtype=jnp.float32) * 0.6

    # Inputs to forward(): theta is a simplex over topics, bows are counts.
    theta = jax.nn.softmax(
        jax.random.normal(k_theta, (BATCH, NUM_TOPICS), dtype=jnp.float32), axis=1)
    bows = jax.random.poisson(k_bows, 1.0, (BATCH, VOCAB_SIZE)).astype(jnp.float32)
    normalized_bows = bows / jnp.maximum(jnp.sum(bows, axis=1, keepdims=True), 1.0)
    kl_theta = jnp.float32(0.1234)

    # One-time weight prep (transpose + lane/tile padding of rho).
    rho_t_padded = prepare_decoder_weights(rho)

    recon_loss, kl_out, preds = etm_hpo_decoder_forward(
        alphas, rho_t_padded, bows, normalized_bows, theta, kl_theta,
        vocab_size=VOCAB_SIZE)
    jax.block_until_ready((recon_loss, preds))

    # Correctness check against a pure-JAX reference.
    ref_recon, _, ref_preds = _reference_forward(alphas, rho, theta, bows, kl_theta)
    assert jnp.allclose(preds, ref_preds, atol=1e-4, rtol=1e-4), "preds mismatch"
    assert jnp.allclose(recon_loss, ref_recon, atol=1e-3, rtol=1e-4), "recon_loss mismatch"
    assert jnp.allclose(kl_out, kl_theta), "kl passthrough mismatch"

    print("KERNEL_OK")
</pallas_src>

<mosaic_0001>
module attributes {stable_mosaic.version = 11 : i64} {
  func.func @etm_kernel(%arg0: i32, %arg1: memref<25x768xf32, #tpu.memory_space<vmem>>, %arg2: memref<768x512xf32, #tpu.memory_space<vmem>>, %arg3: memref<8x25xf32, #tpu.memory_space<vmem>>, %arg4: memref<8x1611xf32, #tpu.memory_space<vmem>>, %arg5: memref<8x2048xf32, #tpu.memory_space<vmem>>, %arg6: memref<8x1xf32, #tpu.memory_space<vmem>>, %arg7: memref<4x25x512xf32, #tpu.memory_space<vmem>>) attributes {dimension_semantics = [#tpu.dimension_semantics<arbitrary>], iteration_bounds = array<i64: 4>, scalar_prefetch = 0 : i64, scratch_operands = 1 : i64, tpu.core_type = #tpu.core_type<tc>, window_params = [{pipeline_mode = #tpu.pipeline_mode<synchronous>, transform_indices = @transform_0, window_bounds = array<i64: 25, 768>}, {transform_indices = @transform_1, window_bounds = array<i64: 768, 512>}, {pipeline_mode = #tpu.pipeline_mode<synchronous>, transform_indices = @transform_2, window_bounds = array<i64: 8, 25>}, {pipeline_mode = #tpu.pipeline_mode<synchronous>, transform_indices = @transform_3, window_bounds = array<i64: 8, 1611>}, {pipeline_mode = #tpu.pipeline_mode<synchronous>, transform_indices = @transform_4, window_bounds = array<i64: 8, 2048>}, {pipeline_mode = #tpu.pipeline_mode<synchronous>, transform_indices = @transform_5, window_bounds = array<i64: 8, 1>}]} {
    %c0 = arith.constant 0 : index
    %c0_0 = arith.constant 0 : index
    %0 = vector.load %arg1[%c0, %c0_0] : memref<25x768xf32, #tpu.memory_space<vmem>>, vector<25x768xf32>
    %c0_1 = arith.constant 0 : index
    %c0_2 = arith.constant 0 : index
    %1 = vector.load %arg2[%c0_1, %c0_2] : memref<768x512xf32, #tpu.memory_space<vmem>>, vector<768x512xf32>
    %cst = arith.constant dense<0.000000e+00> : vector<25x512xf32>
    %2 = tpu.matmul %0, %1, %cst {dimension_numbers = #tpu.dot_dimension_numbers<[1], [0], [0], [1], [0, 0, 1, 1], [], []>} : vector<25x768xf32>, vector<768x512xf32>, vector<25x512xf32> -> vector<25x512xf32>
    %3 = arith.index_cast %arg0 : i32 to index
    %c0_3 = arith.constant 0 : index
    %c0_4 = arith.constant 0 : index
    %4 = vector.load %arg7[%3, %c0_3, %c0_4] : memref<4x25x512xf32, #tpu.memory_space<vmem>>, vector<1x25x512xf32>
    %5 = vector.shape_cast %4 : vector<1x25x512xf32> to vector<25x512xf32>
    %6 = vector.shape_cast %2 : vector<25x512xf32> to vector<1x25x512xf32>
    tpu.vector_store %arg7[%3, %c0_3, %c0_4], %6 {strides = array<i32>} : memref<4x25x512xf32, #tpu.memory_space<vmem>>, vector<1x25x512xf32>,
    %c3_i32 = arith.constant 3 : i32
    %7 = arith.cmpi eq, %arg0, %c3_i32 : i32
    %8 = arith.extui %7 : i1 to i32
    %c0_i32 = arith.constant 0 : i32
    %9 = arith.cmpi ne, %8, %c0_i32 : i32
    scf.if %9 {
      %c0_5 = arith.constant 0 : index
      %c0_6 = arith.constant 0 : index
      %c0_7 = arith.constant 0 : index
      %10 = vector.load %arg7[%c0_5, %c0_6, %c0_7] : memref<4x25x512xf32, #tpu.memory_space<vmem>>, vector<1x25x512xf32>
      %11 = vector.shape_cast %10 : vector<1x25x512xf32> to vector<25x512xf32>
      %cst_8 = arith.constant dense<0xFF800000> : vector<25xf32>
      %12 = vector.multi_reduction <maximumf>, %11, %cst_8 [1] : vector<25x512xf32> to vector<25xf32>
      %13 = vector.shape_cast %12 : vector<25xf32> to vector<25x1xf32>
      %c1 = arith.constant 1 : index
      %c0_9 = arith.constant 0 : index
      %c0_10 = arith.constant 0 : index
      %14 = vector.load %arg7[%c1, %c0_9, %c0_10] : memref<4x25x512xf32, #tpu.memory_space<vmem>>, vector<1x25x512xf32>
      %15 = vector.shape_cast %14 : vector<1x25x512xf32> to vector<25x512xf32>
      %cst_11 = arith.constant dense<0xFF800000> : vector<25xf32>
      %16 = vector.multi_reduction <maximumf>, %15, %cst_11 [1] : vector<25x512xf32> to vector<25xf32>
      %17 = vector.shape_cast %16 : vector<25xf32> to vector<25x1xf32>
      %18 = arith.maximumf %13, %17 : vector<25x1xf32>
      %c2 = arith.constant 2 : index
      %c0_12 = arith.constant 0 : index
      %c0_13 = arith.constant 0 : index
      %19 = vector.load %arg7[%c2, %c0_12, %c0_13] : memref<4x25x512xf32, #tpu.memory_space<vmem>>, vector<1x25x512xf32>
      %20 = vector.shape_cast %19 : vector<1x25x512xf32> to vector<25x512xf32>
      %cst_14 = arith.constant dense<0xFF800000> : vector<25xf32>
      %21 = vector.multi_reduction <maximumf>, %20, %cst_14 [1] : vector<25x512xf32> to vector<25xf32>
      %22 = vector.shape_cast %21 : vector<25xf32> to vector<25x1xf32>
      %23 = arith.maximumf %18, %22 : vector<25x1xf32>
      %c3 = arith.constant 3 : index
      %c0_15 = arith.constant 0 : index
      %c0_16 = arith.constant 0 : index
      %24 = vector.load %arg7[%c3, %c0_15, %c0_16] : memref<4x25x512xf32, #tpu.memory_space<vmem>>, vector<1x25x512xf32>
      %25 = vector.shape_cast %24 : vector<1x25x512xf32> to vector<25x512xf32>
      %cst_17 = arith.constant dense<0xFF800000> : vector<25xf32>
      %26 = vector.multi_reduction <maximumf>, %25, %cst_17 [1] : vector<25x512xf32> to vector<25xf32>
      %27 = vector.shape_cast %26 : vector<25xf32> to vector<25x1xf32>
      %28 = arith.maximumf %23, %27 : vector<25x1xf32>
      %c0_18 = arith.constant 0 : index
      %c0_19 = arith.constant 0 : index
      %c0_20 = arith.constant 0 : index
      %29 = vector.load %arg7[%c0_18, %c0_19, %c0_20] : memref<4x25x512xf32, #tpu.memory_space<vmem>>, vector<1x25x512xf32>
      %30 = vector.shape_cast %29 : vector<1x25x512xf32> to vector<25x512xf32>
      %31 = vector.broadcast %28 : vector<25x1xf32> to vector<25x512xf32>
      %32 = arith.subf %30, %31 : vector<25x512xf32>
      %33 = math.exp %32 : vector<25x512xf32>
      %c1_21 = arith.constant 1 : index
      %c0_22 = arith.constant 0 : index
      %c0_23 = arith.constant 0 : index
      %34 = vector.load %arg7[%c1_21, %c0_22, %c0_23] : memref<4x25x512xf32, #tpu.memory_space<vmem>>, vector<1x25x512xf32>
      %35 = vector.shape_cast %34 : vector<1x25x512xf32> to vector<25x512xf32>
      %36 = vector.broadcast %28 : vector<25x1xf32> to vector<25x512xf32>
      %37 = arith.subf %35, %36 : vector<25x512xf32>
      %38 = math.exp %37 : vector<25x512xf32>
      %c2_24 = arith.constant 2 : index
      %c0_25 = arith.constant 0 : index
      %c0_26 = arith.constant 0 : index
      %39 = vector.load %arg7[%c2_24, %c0_25, %c0_26] : memref<4x25x512xf32, #tpu.memory_space<vmem>>, vector<1x25x512xf32>
      %40 = vector.shape_cast %39 : vector<1x25x512xf32> to vector<25x512xf32>
      %41 = vector.broadcast %28 : vector<25x1xf32> to vector<25x512xf32>
      %42 = arith.subf %40, %41 : vector<25x512xf32>
      %43 = math.exp %42 : vector<25x512xf32>
      %c3_27 = arith.constant 3 : index
      %c0_28 = arith.constant 0 : index
      %c0_29 = arith.constant 0 : index
      %44 = vector.load %arg7[%c3_27, %c0_28, %c0_29] : memref<4x25x512xf32, #tpu.memory_space<vmem>>, vector<1x25x512xf32>
      %45 = vector.shape_cast %44 : vector<1x25x512xf32> to vector<25x512xf32>
      %46 = vector.broadcast %28 : vector<25x1xf32> to vector<25x512xf32>
      %47 = arith.subf %45, %46 : vector<25x512xf32>
      %48 = math.exp %47 : vector<25x512xf32>
      %49 = tpu.iota {dimensions = array<i32: 1>} : vector<25x512xi32>
      %c75_i32 = arith.constant 75 : i32
      %50 = vector.broadcast %c75_i32 : i32 to vector<25x512xi32>
      %51 = arith.cmpi slt, %49, %50 : vector<25x512xi32>
      %cst_30 = arith.constant 0.000000e+00 : f32
      %52 = vector.broadcast %cst_30 : f32 to vector<25x512xf32>
      %53 = arith.select %51, %48, %52 : vector<25x512xi1>, vector<25x512xf32>
      %cst_31 = arith.constant dense<0.000000e+00> : vector<25xf32>
      %54 = vector.multi_reduction <add>, %33, %cst_31 [1] : vector<25x512xf32> to vector<25xf32>
      %cst_32 = arith.constant dense<0.000000e+00> : vector<25xf32>
      %55 = vector.multi_reduction <add>, %38, %cst_32 [1] : vector<25x512xf32> to vector<25xf32>
      %56 = arith.addf %54, %55 : vector<25xf32>
      %cst_33 = arith.constant dense<0.000000e+00> : vector<25xf32>
      %57 = vector.multi_reduction <add>, %43, %cst_33 [1] : vector<25x512xf32> to vector<25xf32>
      %58 = arith.addf %56, %57 : vector<25xf32>
      %cst_34 = arith.constant dense<0.000000e+00> : vector<25xf32>
      %59 = vector.multi_reduction <add>, %53, %cst_34 [1] : vector<25x512xf32> to vector<25xf32>
      %60 = arith.addf %58, %59 : vector<25xf32>
      %61 = tpu.reciprocal %60 : vector<25xf32> -> vector<25xf32>
      %c0_35 = arith.constant 0 : index
      %c0_36 = arith.constant 0 : index
      %62 = vector.load %arg3[%c0_35, %c0_36] : memref<8x25xf32, #tpu.memory_space<vmem>>, vector<8x25xf32>
      %63 = vector.shape_cast %61 : vector<25xf32> to vector<1x25xf32>
      %64 = vector.broadcast %63 : vector<1x25xf32> to vector<8x25xf32>
      %65 = arith.mulf %62, %64 : vector<8x25xf32>
      %cst_37 = arith.constant 0.000000e+00 : f32
      %66 = vector.broadcast %cst_37 : f32 to vector<8x1xf32>
      %cst_38 = arith.constant dense<0.000000e+00> : vector<8x512xf32>
      %67 = tpu.matmul %65, %33, %cst_38 {dimension_numbers = #tpu.dot_dimension_numbers<[1], [0], [0], [1], [0, 0, 1, 1], [], []>} : vector<8x25xf32>, vector<25x512xf32>, vector<8x512xf32> -> vector<8x512xf32>
      %cst_39 = arith.constant 9.99999997E-7 : f32
      %68 = vector.broadcast %cst_39 : f32 to vector<8x512xf32>
      %69 = arith.addf %67, %68 : vector<8x512xf32>
      %70 = math.log %69 : vector<8x512xf32>
      %c0_40 = arith.constant 0 : index
      %c0_41 = arith.constant 0 : index
      %71 = vector.load %arg5[%c0_40, %c0_41] : memref<8x2048xf32, #tpu.memory_space<vmem>>, vector<8x512xf32>
      tpu.vector_store %arg5[%c0_40, %c0_41], %70 {strides = array<i32>} : memref<8x2048xf32, #tpu.memory_space<vmem>>, vector<8x512xf32>,
      %c0_42 = arith.constant 0 : index
      %c0_43 = arith.constant 0 : index
      %72 = vector.load %arg4[%c0_42, %c0_43] : memref<8x1611xf32, #tpu.memory_space<vmem>>, vector<8x512xf32>
      %73 = arith.mulf %70, %72 : vector<8x512xf32>
      %cst_44 = arith.constant dense<0.000000e+00> : vector<8xf32>
      %74 = vector.multi_reduction <add>, %73, %cst_44 [1] : vector<8x512xf32> to vector<8xf32>
      %75 = vector.shape_cast %74 : vector<8xf32> to vector<8x1xf32>
      %76 = arith.addf %66, %75 : vector<8x1xf32>
      %cst_45 = arith.constant dense<0.000000e+00> : vector<8x512xf32>
      %77 = tpu.matmul %65, %38, %cst_45 {dimension_numbers = #tpu.dot_dimension_numbers<[1], [0], [0], [1], [0, 0, 1, 1], [], []>} : vector<8x25xf32>, vector<25x512xf32>, vector<8x512xf32> -> vector<8x512xf32>
      %cst_46 = arith.constant 9.99999997E-7 : f32
      %78 = vector.broadcast %cst_46 : f32 to vector<8x512xf32>
      %79 = arith.addf %77, %78 : vector<8x512xf32>
      %80 = math.log %79 : vector<8x512xf32>
      %c0_47 = arith.constant 0 : index
      %c512 = arith.constant 512 : index
      %81 = vector.load %arg5[%c0_47, %c512] : memref<8x2048xf32, #tpu.memory_space<vmem>>, vector<8x512xf32>
      tpu.vector_store %arg5[%c0_47, %c512], %80 {strides = array<i32>} : memref<8x2048xf32, #tpu.memory_space<vmem>>, vector<8x512xf32>,
      %c0_48 = arith.constant 0 : index
      %c512_49 = arith.constant 512 : index
      %82 = vector.load %arg4[%c0_48, %c512_49] : memref<8x1611xf32, #tpu.memory_space<vmem>>, vector<8x512xf32>
      %83 = arith.mulf %80, %82 : vector<8x512xf32>
      %cst_50 = arith.constant dense<0.000000e+00> : vector<8xf32>
      %84 = vector.multi_reduction <add>, %83, %cst_50 [1] : vector<8x512xf32> to vector<8xf32>
      %85 = vector.shape_cast %84 : vector<8xf32> to vector<8x1xf32>
      %86 = arith.addf %76, %85 : vector<8x1xf32>
      %cst_51 = arith.constant dense<0.000000e+00> : vector<8x512xf32>
      %87 = tpu.matmul %65, %43, %cst_51 {dimension_numbers = #tpu.dot_dimension_numbers<[1], [0], [0], [1], [0, 0, 1, 1], [], []>} : vector<8x25xf32>, vector<25x512xf32>, vector<8x512xf32> -> vector<8x512xf32>
      %cst_52 = arith.constant 9.99999997E-7 : f32
      %88 = vector.broadcast %cst_52 : f32 to vector<8x512xf32>
      %89 = arith.addf %87, %88 : vector<8x512xf32>
      %90 = math.log %89 : vector<8x512xf32>
      %c0_53 = arith.constant 0 : index
      %c1024 = arith.constant 1024 : index
      %91 = vector.load %arg5[%c0_53, %c1024] : memref<8x2048xf32, #tpu.memory_space<vmem>>, vector<8x512xf32>
      tpu.vector_store %arg5[%c0_53, %c1024], %90 {strides = array<i32>} : memref<8x2048xf32, #tpu.memory_space<vmem>>, vector<8x512xf32>,
      %c0_54 = arith.constant 0 : index
      %c1024_55 = arith.constant 1024 : index
      %92 = vector.load %arg4[%c0_54, %c1024_55] : memref<8x1611xf32, #tpu.memory_space<vmem>>, vector<8x512xf32>
      %93 = arith.mulf %90, %92 : vector<8x512xf32>
      %cst_56 = arith.constant dense<0.000000e+00> : vector<8xf32>
      %94 = vector.multi_reduction <add>, %93, %cst_56 [1] : vector<8x512xf32> to vector<8xf32>
      %95 = vector.shape_cast %94 : vector<8xf32> to vector<8x1xf32>
      %96 = arith.addf %86, %95 : vector<8x1xf32>
      %cst_57 = arith.constant dense<0.000000e+00> : vector<8x512xf32>
      %97 = tpu.matmul %65, %53, %cst_57 {dimension_numbers = #tpu.dot_dimension_numbers<[1], [0], [0], [1], [0, 0, 1, 1], [], []>} : vector<8x25xf32>, vector<25x512xf32>, vector<8x512xf32> -> vector<8x512xf32>
      %cst_58 = arith.constant 9.99999997E-7 : f32
      %98 = vector.broadcast %cst_58 : f32 to vector<8x512xf32>
      %99 = arith.addf %97, %98 : vector<8x512xf32>
      %100 = math.log %99 : vector<8x512xf32>
      %c0_59 = arith.constant 0 : index
      %c1536 = arith.constant 1536 : index
      %101 = vector.load %arg5[%c0_59, %c1536] : memref<8x2048xf32, #tpu.memory_space<vmem>>, vector<8x512xf32>
      tpu.vector_store %arg5[%c0_59, %c1536], %100 {strides = array<i32>} : memref<8x2048xf32, #tpu.memory_space<vmem>>, vector<8x512xf32>,
      %102 = vector.extract_strided_slice %100 {offsets = [0, 0], sizes = [8, 75], strides = [1, 1]} : vector<8x512xf32> to vector<8x75xf32>
      %c0_60 = arith.constant 0 : index
      %c1536_61 = arith.constant 1536 : index
      %103 = vector.load %arg4[%c0_60, %c1536_61] : memref<8x1611xf32, #tpu.memory_space<vmem>>, vector<8x75xf32>
      %104 = arith.mulf %102, %103 : vector<8x75xf32>
      %cst_62 = arith.constant dense<0.000000e+00> : vector<8xf32>
      %105 = vector.multi_reduction <add>, %104, %cst_62 [1] : vector<8x75xf32> to vector<8xf32>
      %106 = vector.shape_cast %105 : vector<8xf32> to vector<8x1xf32>
      %107 = arith.addf %96, %106 : vector<8x1xf32>
      %cst_63 = arith.constant 0.000000e+00 : f32
      %108 = vector.broadcast %cst_63 : f32 to vector<8x1xf32>
      %109 = arith.subf %108, %107 : vector<8x1xf32>
      %c0_64 = arith.constant 0 : index
      %c0_65 = arith.constant 0 : index
      %110 = vector.load %arg6[%c0_64, %c0_65] : memref<8x1xf32, #tpu.memory_space<vmem>>, vector<8x1xf32>
      tpu.vector_store %arg6[%c0_64, %c0_65], %109 {strides = array<i32>} : memref<8x1xf32, #tpu.memory_space<vmem>>, vector<8x1xf32>,
    } else {
    }
    return
  }
  func.func @transform_0(%arg0: i32) -> (i32, i32) {
    %c0_i32 = arith.constant 0 : i32
    %c0_i32_0 = arith.constant 0 : i32
    %c0_i32_1 = arith.constant 0 : i32
    return %c0_i32, %c0_i32_0 : i32, i32
  }
  func.func @transform_1(%arg0: i32) -> (i32, i32) {
    %c0_i32 = arith.constant 0 : i32
    %c0_i32_0 = arith.constant 0 : i32
    return %c0_i32, %arg0 : i32, i32
  }
  func.func @transform_2(%arg0: i32) -> (i32, i32) {
    %c0_i32 = arith.constant 0 : i32
    %c0_i32_0 = arith.constant 0 : i32
    %c0_i32_1 = arith.constant 0 : i32
    return %c0_i32, %c0_i32_0 : i32, i32
  }
  func.func @transform_3(%arg0: i32) -> (i32, i32) {
    %c0_i32 = arith.constant 0 : i32
    %c0_i32_0 = arith.constant 0 : i32
    %c0_i32_1 = arith.constant 0 : i32
    return %c0_i32, %c0_i32_0 : i32, i32
  }
  func.func @transform_4(%arg0: i32) -> (i32, i32) {
    %c0_i32 = arith.constant 0 : i32
    %c0_i32_0 = arith.constant 0 : i32
    %c0_i32_1 = arith.constant 0 : i32
    return %c0_i32, %c0_i32_0 : i32, i32
  }
  func.func @transform_5(%arg0: i32) -> (i32, i32) {
    %c0_i32 = arith.constant 0 : i32
    %c0_i32_0 = arith.constant 0 : i32
    %c0_i32_1 = arith.constant 0 : i32
    return %c0_i32, %c0_i32_0 : i32, i32
  }
}

</mosaic_0001>

<llo_original>
// kernel: tpu_custom_call.1
$region0: #{tpu_custom_call.1}
  #allocation0 [shape = 'u32[]', space=smem, size = 0x4, offset = 0x4, fixed_abs, tag = 'smem constant byte address 0x4 - core index']
  #allocation1 [shape = 'u32[72,128]{1,0:T(1,128)}', space=vmem, size = 0x9000, scoped, tag = 'internal scratch']
  #allocation2 [shape = 'f32[4,25,512]{2,1,0:T(8,128)}', space=vmem, size = 0x40000, scoped, tag = 'scratch operand']
  %s0 = inlined_call_operand.hbm [shape: f32[25,768], index: 0, kind: input, shape index: {}]
  %s1 = inlined_call_operand.hbm [shape: f32[768,2048], index: 1, kind: input, shape index: {}]
  %s2 = inlined_call_operand.hbm [shape: f32[8,25], index: 2, kind: input, shape index: {}]
  %s3 = inlined_call_operand.hbm [shape: f32[8,1611], index: 3, kind: input, shape index: {}]
  %s4 = inlined_call_operand.hbm [shape: f32[8,2048], index: 4, kind: output, shape index: {0}]
  %s5 = inlined_call_operand.vmem [shape: f32[8,1], index: 5, kind: output, shape index: {1}]
  %6 = xla_tuple %s4, %s5
  %s7 = sld [smem:[#allocation0]]
  $region77: #{tpu_custom_call.1} parent=0
    _
  %s9 = ssub.s32 1, %s7
  %s10 = scalar_select 0, %s9, %s7
  $region1: #{tpu_custom_call.1} parent=0
    #allocation3 [shape = 'u8[98304]{0}', space=vmem, size = 0x18000, scoped, tag = 'input window, operand 0, single buffered']
    #allocation4 [shape = 's32[2]{0}', space=sflag, size = 0x8, scoped, tag = 'scoped memory for tpu_custom_call.1']
    #allocation5 [shape = 's32[2]{0}', space=sflag, size = 0x8, scoped, tag = 'scoped memory for tpu_custom_call.1']
    #allocation6 [shape = 'u8[3145728]{0}', space=vmem, size = 0x300000, scoped, tag = 'input window, operand 1']
    #allocation7 [shape = 's32[2]{0}', space=sflag, size = 0x8, scoped, tag = 'scoped memory for tpu_custom_call.1']
    #allocation8 [shape = 'u8[4096]{0}', space=vmem, size = 0x1000, scoped, tag = 'input window, operand 2, single buffered']
    #allocation9 [shape = 'u8[53248]{0}', space=vmem, size = 0xd000, scoped, tag = 'input window, operand 3, single buffered']
    #allocation10 [shape = 's32[1]{0}', space=sflag, size = 0x4, scoped, tag = 'scoped memory for tpu_custom_call.1']
    #allocation11 [shape = 'u8[65536]{0}', space=vmem, size = 0x10000, scoped, tag = 'output window, operand 0, single buffered']
    %11 = vsyncpa [#allocation4], 0
    %12 = vsyncpa [#allocation7], 0
    %s13 = scalar_lea.sflag [#allocation7], 1
    %14 = vsyncpa %s13, 0
    %15 = vsyncpa [#allocation10], 0
    %16 = vsyncpa [#allocation5], 0
    loop: start=0, step=1, limit=6
    $region2: #{tpu_custom_call.1} parent=1 // loop_pre_header
      _
    $region3: #{tpu_custom_call.1} parent=1 // loop_header
      %s18 = sphi 0, %s22
      %p19 = scmp.ge.s32.totalorder %s18, 6
      %s26 = sphi 0, %s26
      %s28 = sphi 0, %s26
      %s29 = sphi 0, %s28
      %s43 = sphi 0, %s29
      %s49 = sphi 0, %s51
      %s52 = sphi 0, %s49
      %s53 = sphi 0, %s52
      %s69 = sphi 0, %s53
      %s73 = sphi 0, %s73
      %s75 = sphi 0, %s73
      %s76 = sphi 0, %s75
      %s90 = sphi 0, %s76
      %s94 = sphi 0, %s94
      %s96 = sphi 0, %s94
      %s97 = sphi 0, %s96
      %s111 = sphi 0, %s97
      %s115 = sphi 0, %s115
      %s117 = sphi 0, %s115
      %s118 = sphi 0, %s117
      %s132 = sphi 0, %s118
      %s136 = sphi 0, %s136
      %s138 = sphi 0, %s136
      %s139 = sphi 0, %s138
      %s153 = sphi 0, %s139
    $region4: #{tpu_custom_call.1} parent=1 // loop_header_branch
      %21 = sbr.rel (%p19) target = $region8
    $region5: #{tpu_custom_call.1} parent=1 // loop_body
      %s23 = ssub.s32 %s18, 1
      %s24 = ssub.s32 %s18, 2
      %s25 = sadd.s32 %s18, 1
      %s27 = sadd.s32 %s26, 1
      %p30 = scmp.eq.s32.totalorder %s18, 3
      %p31 = scmp.ne.s32.totalorder %s26, %s28
      %p32 = scmp.eq.s32.totalorder %s18, 0
      %p33 = por %p31, %p32
      %p34 = scmp.ne.s32.totalorder %s26, %s28
      %p35 = scmp.eq.s32.totalorder %s23, 3
      %p36 = por %p34, %p35
      %p37 = scmp.ne.s32.totalorder %s28, %s29
      %p38 = scmp.eq.s32.totalorder %s23, 0
      %p39 = por %p37, %p38
      %p40 = scmp.ne.s32.totalorder %s28, %s29
      %p41 = scmp.eq.s32.totalorder %s24, 3
      %p42 = por %p40, %p41
      %p44 = scmp.ne.s32.totalorder %s29, %s43
      %p45 = scmp.eq.s32.totalorder %s24, 0
      %p46 = por %p44, %p45
      %s47 = ssub.s32 %s18, %s25
      %p48 = scmp.eq.s32.totalorder %s47, 0
      %s50 = sadd.s32 %s49, 1
      %s51 = scalar_select %p48, %s49, %s50
      %p54 = pneg %p48
      %p55 = scmp.eq.s32.totalorder %s18, 3
      %p56 = por %p54, %p55
      %p57 = scmp.ne.s32.totalorder %s49, %s52
      %p58 = scmp.eq.s32.totalorder %s18, 0
      %p59 = por %p57, %p58
      %p60 = scmp.ne.s32.totalorder %s49, %s52
      %p61 = scmp.eq.s32.totalorder %s23, 3
      %p62 = por %p60, %p61
      %p63 = scmp.ne.s32.totalorder %s52, %s53
      %p64 = scmp.eq.s32.totalorder %s23, 0
      %p65 = por %p63, %p64
      %p66 = scmp.ne.s32.totalorder %s52, %s53
      %p67 = scmp.eq.s32.totalorder %s24, 3
      %p68 = por %p66, %p67
      %p70 = scmp.ne.s32.totalorder %s53, %s69
      %p71 = scmp.eq.s32.totalorder %s24, 0
      %p72 = por %p70, %p71
      %s74 = sadd.s32 %s73, 1
      %p77 = scmp.eq.s32.totalorder %s18, 3
      %p78 = scmp.ne.s32.totalorder %s73, %s75
      %p79 = scmp.eq.s32.totalorder %s18, 0
      %p80 = por %p78, %p79
      %p81 = scmp.ne.s32.totalorder %s73, %s75
      %p82 = scmp.eq.s32.totalorder %s23, 3
      %p83 = por %p81, %p82
      %p84 = scmp.ne.s32.totalorder %s75, %s76
      %p85 = scmp.eq.s32.totalorder %s23, 0
      %p86 = por %p84, %p85
      %p87 = scmp.ne.s32.totalorder %s75, %s76
      %p88 = scmp.eq.s32.totalorder %s24, 3
      %p89 = por %p87, %p88
      %p91 = scmp.ne.s32.totalorder %s76, %s90
      %p92 = scmp.eq.s32.totalorder %s24, 0
      %p93 = por %p91, %p92
      %s95 = sadd.s32 %s94, 1
      %p98 = scmp.eq.s32.totalorder %s18, 3
      %p99 = scmp.ne.s32.totalorder %s94, %s96
      %p100 = scmp.eq.s32.totalorder %s18, 0
      %p101 = por %p99, %p100
      %p102 = scmp.ne.s32.totalorder %s94, %s96
      %p103 = scmp.eq.s32.totalorder %s23, 3
      %p104 = por %p102, %p103
      %p105 = scmp.ne.s32.totalorder %s96, %s97
      %p106 = scmp.eq.s32.totalorder %s23, 0
      %p107 = por %p105, %p106
      %p108 = scmp.ne.s32.totalorder %s96, %s97
      %p109 = scmp.eq.s32.totalorder %s24, 3
      %p110 = por %p108, %p109
      %p112 = scmp.ne.s32.totalorder %s97, %s111
      %p113 = scmp.eq.s32.totalorder %s24, 0
      %p114 = por %p112, %p113
      %s116 = sadd.s32 %s115, 1
      %p119 = scmp.eq.s32.totalorder %s18, 3
      %p120 = scmp.ne.s32.totalorder %s115, %s117
      %p121 = scmp.eq.s32.totalorder %s18, 0
      %p122 = por %p120, %p121
      %p123 = scmp.ne.s32.totalorder %s115, %s117
      %p124 = scmp.eq.s32.totalorder %s23, 3
      %p125 = por %p123, %p124
      %p126 = scmp.ne.s32.totalorder %s117, %s118
      %p127 = scmp.eq.s32.totalorder %s23, 0
      %p128 = por %p126, %p127
      %p129 = scmp.ne.s32.totalorder %s117, %s118
      %p130 = scmp.eq.s32.totalorder %s24, 3
      %p131 = por %p129, %p130
      %p133 = scmp.ne.s32.totalorder %s118, %s132
      %p134 = scmp.eq.s32.totalorder %s24, 0
      %p135 = por %p133, %p134
      %s137 = sadd.s32 %s136, 1
      %p140 = scmp.eq.s32.totalorder %s18, 3
      %p141 = scmp.ne.s32.totalorder %s136, %s138
      %p142 = scmp.eq.s32.totalorder %s18, 0
      %p143 = por %p141, %p142
      %p144 = scmp.ne.s32.totalorder %s136, %s138
      %p145 = scmp.eq.s32.totalorder %s23, 3
      %p146 = por %p144, %p145
      %p147 = scmp.ne.s32.totalorder %s138, %s139
      %p148 = scmp.eq.s32.totalorder %s23, 0
      %p149 = por %p147, %p148
      %p150 = scmp.ne.s32.totalorder %s138, %s139
      %p151 = scmp.eq.s32.totalorder %s24, 3
      %p152 = por %p150, %p151
      %p154 = scmp.ne.s32.totalorder %s139, %s153
      %p155 = scmp.eq.s32.totalorder %s24, 0
      %p156 = por %p154, %p155
      %p157 = scmp.le.s32.totalorder 1, %s18
      %p158 = scmp.lt.s32.totalorder %s18, 5
      %p159 = pnand %p157, %p158
      %p160 = pneg %p159
      // Predicated region
      $region9: #{tpu_custom_call.1} parent=5 // pred_check
        _
      $region10: #{tpu_custom_call.1} parent=5 // pred_check_branch
        %162 = sbr.rel (%p159) target = $region12
      $region11: #{tpu_custom_call.1} parent=5 // pred_region
        %s163 = ssub.s32 %s18, 1
        // Predicated region
        $region13: #{tpu_custom_call.1} parent=11 // pred_check
          %p164 = pneg %p39
        $region14: #{tpu_custom_call.1} parent=11 // pred_check_branch
          %166 = sbr.rel (%p164) target = $region16
        $region15: #{tpu_custom_call.1} parent=11 // pred_region
          %168 = vsyncadd [#allocation4], 0
          %s169 = sshll.u32 %s0, 4
          %s170 = int_to_ptr.hbm [resolvable:$true] %s169
          %s171 = sshll.u32 [#allocation3], 4
          %s172 = int_to_ptr.vmem [resolvable:$true] %s171
          %177 = dma.hbm_to_vmem [thread:$0]  %s170, 3072, %s172, [#allocation4], 768, 768, 48
        $region16: #{tpu_custom_call.1} parent=11 // pred_fallthru
          _
        // Predicated region
        $region17: #{tpu_custom_call.1} parent=11 // pred_check
          %p178 = pneg %p86
        $region18: #{tpu_custom_call.1} parent=11 // pred_check_branch
          %180 = sbr.rel (%p178) target = $region20
        $region19: #{tpu_custom_call.1} parent=11 // pred_region
          %182 = vsyncadd [#allocation7], 0
          %s184 = sshll.u32 %s2, 4
          %s185 = int_to_ptr.hbm [resolvable:$true] %s184
          %s186 = sshll.u32 [#allocation8], 4
          %s187 = int_to_ptr.vmem [resolvable:$true] %s186
          %189 = dma.hbm_to_vmem [thread:$0]  %s185, 128, %s187, [#allocation7]
        $region20: #{tpu_custom_call.1} parent=11 // pred_fallthru
          _
        // Predicated region
        $region21: #{tpu_custom_call.1} parent=11 // pred_check
          %p190 = pneg %p107
        $region22: #{tpu_custom_call.1} parent=11 // pred_check_branch
          %192 = sbr.rel (%p190) target = $region24
        $region23: #{tpu_custom_call.1} parent=11 // pred_region
          %194 = vsyncadd [#allocation10], 0
          %s196 = sshll.u32 %s3, 4
          %s197 = int_to_ptr.hbm [resolvable:$true] %s196
          %s198 = sshll.u32 [#allocation9], 4
          %s199 = int_to_ptr.vmem [resolvable:$true] %s198
          %201 = dma.hbm_to_vmem [thread:$0]  %s197, 1664, %s199, [#allocation10]
        $region24: #{tpu_custom_call.1} parent=11 // pred_fallthru
          _
      $region12: #{tpu_custom_call.1} parent=5 // pred_fallthru
        _
      %p202 = scmp.lt.s32.totalorder %s18, 4
      // Predicated region
      $region25: #{tpu_custom_call.1} parent=5 // pred_check
        %p203 = pneg %p202
      $region26: #{tpu_custom_call.1} parent=5 // pred_check_branch
        %205 = sbr.rel (%p203) target = $region28
      $region27: #{tpu_custom_call.1} parent=5 // pred_region
        // Predicated region
        $region29: #{tpu_custom_call.1} parent=27 // pred_check
          %p206 = pneg %p59
        $region30: #{tpu_custom_call.1} parent=27 // pred_check_branch
          %208 = sbr.rel (%p206) target = $region32
        $region31: #{tpu_custom_call.1} parent=27 // pred_region
          %s209 = sand.u32 %s18, 1
          %s210 = scalar_lea.sflag [#allocation7], %s209
          %s211 = sand.u32 %s49, 1
          %s212 = smul.addr %s211, 3072
          %s213 = scalar_lea.vmem [#allocation6], %s212
          %s214 = smul.u32 4, %s18
          %216 = vsyncadd %s210, 0
          %s217 = smul.addr %s214, 8
          %s218 = scalar_lea.hbm %s1, %s217
          %s219 = sshll.u32 %s218, 4
          %s220 = int_to_ptr.hbm [resolvable:$true] %s219
          %s221 = sshll.u32 %s213, 4
          %s222 = int_to_ptr.vmem [resolvable:$true] %s221
          %227 = dma.hbm_to_vmem [thread:$0]  %s220, 49152, %s222, %s210, 2048, 512, 32
        $region32: #{tpu_custom_call.1} parent=27 // pred_fallthru
          _
      $region28: #{tpu_custom_call.1} parent=5 // pred_fallthru
        _
      %p228 = scmp.le.s32.totalorder 1, %s18
      %p229 = scmp.lt.s32.totalorder %s18, 5
      %p230 = pnand %p228, %p229
      %p231 = pneg %p230
      // Predicated region
      $region33: #{tpu_custom_call.1} parent=5 // pred_check
        _
      $region34: #{tpu_custom_call.1} parent=5 // pred_check_branch
        %233 = sbr.rel (%p230) target = $region36
      $region35: #{tpu_custom_call.1} parent=5 // pred_region
        %s234 = ssub.s32 %s18, 1
        // Predicated region
        $region37: #{tpu_custom_call.1} parent=35 // pred_check
          %p235 = pneg %p39
        $region38: #{tpu_custom_call.1} parent=35 // pred_check_branch
          %237 = sbr.rel (%p235) target = $region40
        $region39: #{tpu_custom_call.1} parent=35 // pred_region
          %239 = dma.done [#allocation4], 3072
        $region40: #{tpu_custom_call.1} parent=35 // pred_fallthru
          _
        %s240 = sand.u32 %s23, 1
        %s241 = scalar_lea.sflag [#allocation7], %s240
        %s242 = sand.u32 %s52, 1
        %s243 = smul.addr %s242, 3072
        %s244 = scalar_lea.vmem [#allocation6], %s243
        // Predicated region
        $region41: #{tpu_custom_call.1} parent=35 // pred_check
          %p245 = pneg %p65
        $region42: #{tpu_custom_call.1} parent=35 // pred_check_branch
          %247 = sbr.rel (%p245) target = $region44
        $region43: #{tpu_custom_call.1} parent=35 // pred_region
          %249 = dma.done %s241, 49152
        $region44: #{tpu_custom_call.1} parent=35 // pred_fallthru
          _
        // Predicated region
        $region45: #{tpu_custom_call.1} parent=35 // pred_check
          %p250 = pneg %p86
        $region46: #{tpu_custom_call.1} parent=35 // pred_check_branch
          %252 = sbr.rel (%p250) target = $region48
        $region47: #{tpu_custom_call.1} parent=35 // pred_region
          %254 = dma.done [#allocation7], 128
        $region48: #{tpu_custom_call.1} parent=35 // pred_fallthru
          _
        // Predicated region
        $region49: #{tpu_custom_call.1} parent=35 // pred_check
          %p255 = pneg %p107
        $region50: #{tpu_custom_call.1} parent=35 // pred_check_branch
          %257 = sbr.rel (%p255) target = $region52
        $region51: #{tpu_custom_call.1} parent=35 // pred_region
          %259 = dma.done [#allocation10], 1664
        $region52: #{tpu_custom_call.1} parent=35 // pred_fallthru
          _
        %p260 = pneg %p39
        %p261 = pneg %p36
        %s262 = sand.u32 %s23, 1
        %s263 = scalar_lea.sflag [#allocation7], %s262
        %s264 = sand.u32 %s52, 1
        %s265 = smul.addr %s264, 3072
        %s266 = scalar_lea.vmem [#allocation6], %s265
        %p267 = pneg %p65
        %p268 = pneg %p62
        %p269 = pneg %p86
        %p270 = pneg %p83
        %p271 = pneg %p107
        %p272 = pneg %p104
        %p273 = pneg %p128
        %p274 = pneg %p125
        %p275 = pneg %p149
        %p276 = pneg %p146
        %s277 = smul.u32 4, %s23
        %v278 = vld [vmem:[#allocation3] sm:$0xff]
        %v279 = vld [vmem:[#allocation3 + $0x8] sm:$0xff]
        %v280 = vld [vmem:[#allocation3 + $0x10] sm:$0xff]
        %v281 = vld [vmem:[#allocation3 + $0x18] sm:$0xff]
        %v282 = vld [vmem:[#allocation3 + $0x20] sm:$0xff]
        %v283 = vld [vmem:[#allocation3 + $0x28] sm:$0xff]
        %v284 = vld [vmem:[#allocation3 + $0x30] sm:$0xff]
        %v285 = vld [vmem:[#allocation3 + $0x38] sm:$0xff]
        %v286 = vld [vmem:[#allocation3 + $0x40] sm:$0xff]
        %v287 = vld [vmem:[#allocation3 + $0x48] sm:$0xff]
        %v288 = vld [vmem:[#allocation3 + $0x50] sm:$0xff]
        %v289 = vld [vmem:[#allocation3 + $0x58] sm:$0xff]
        %v290 = vld [vmem:[#allocation3 + $0x60] sm:$0xff]
        %v291 = vld [vmem:[#allocation3 + $0x68] sm:$0xff]
        %v292 = vld [vmem:[#allocation3 + $0x70] sm:$0xff]
        %v293 = vld [vmem:[#allocation3 + $0x78] sm:$0xff]
        %v294 = vld [vmem:[#allocation3 + $0x80] sm:$0xff]
        %v295 = vld [vmem:[#allocation3 + $0x88] sm:$0xff]
        %v296 = vld [vmem:[#allocation3 + $0x90] sm:$0x1]
        %v297 = vld [vmem:[#allocation3 + $0x98] sm:$0x1]
        %v298 = vld [vmem:[#allocation3 + $0xa0] sm:$0x1]
        %v299 = vld [vmem:[#allocation3 + $0xa8] sm:$0x1]
        %v300 = vld [vmem:[#allocation3 + $0xb0] sm:$0x1]
        %v301 = vld [vmem:[#allocation3 + $0xb8] sm:$0x1]
        %v302 = vld [vmem:[%s244] sm:$0xff]
        %v303 = vld [vmem:[%s244 + $0x8] sm:$0xff]
        %v304 = vld [vmem:[%s244 + $0x10] sm:$0xff]
        %v305 = vld [vmem:[%s244 + $0x18] sm:$0xff]
        %v306 = vld [vmem:[%s244 + $0x20] sm:$0xff]
        %v307 = vld [vmem:[%s244 + $0x28] sm:$0xff]
        %v308 = vld [vmem:[%s244 + $0x30] sm:$0xff]
        %v309 = vld [vmem:[%s244 + $0x38] sm:$0xff]
        %v310 = vld [vmem:[%s244 + $0x40] sm:$0xff]
        %v311 = vld [vmem:[%s244 + $0x48] sm:$0xff]
        %v312 = vld [vmem:[%s244 + $0x50] sm:$0xff]
        %v313 = vld [vmem:[%s244 + $0x58] sm:$0xff]
        %v314 = vld [vmem:[%s244 + $0x60] sm:$0xff]
        %v315 = vld [vmem:[%s244 + $0x68] sm:$0xff]
        %v316 = vld [vmem:[%s244 + $0x70] sm:$0xff]
        %v317 = vld [vmem:[%s244 + $0x78] sm:$0xff]
        %v318 = vld [vmem:[%s244 + $0x80] sm:$0xff]
        %v319 = vld [vmem:[%s244 + $0x88] sm:$0xff]
        %v320 = vld [vmem:[%s244 + $0x90] sm:$0xff]
        %v321 = vld [vmem:[%s244 + $0x98] sm:$0xff]
        %v322 = vld [vmem:[%s244 + $0xa0] sm:$0xff]
        %v323 = vld [vmem:[%s244 + $0xa8] sm:$0xff]
        %v324 = vld [vmem:[%s244 + $0xb0] sm:$0xff]
        %v325 = vld [vmem:[%s244 + $0xb8] sm:$0xff]
        %v326 = vld [vmem:[%s244 + $0xc0] sm:$0xff]
        %v327 = vld [vmem:[%s244 + $0xc8] sm:$0xff]
        %v328 = vld [vmem:[%s244 + $0xd0] sm:$0xff]
        %v329 = vld [vmem:[%s244 + $0xd8] sm:$0xff]
        %v330 = vld [vmem:[%s244 + $0xe0] sm:$0xff]
        %v331 = vld [vmem:[%s244 + $0xe8] sm:$0xff]
        %v332 = vld [vmem:[%s244 + $0xf0] sm:$0xff]
        %v333 = vld [vmem:[%s244 + $0xf8] sm:$0xff]
        %v334 = vld [vmem:[%s244 + $0x100] sm:$0xff]
        %v335 = vld [vmem:[%s244 + $0x108] sm:$0xff]
        %v336 = vld [vmem:[%s244 + $0x110] sm:$0xff]
        %v337 = vld [vmem:[%s244 + $0x118] sm:$0xff]
        %v338 = vld [vmem:[%s244 + $0x120] sm:$0xff]
        %v339 = vld [vmem:[%s244 + $0x128] sm:$0xff]
        %v340 = vld [vmem:[%s244 + $0x130] sm:$0xff]
        %v341 = vld [vmem:[%s244 + $0x138] sm:$0xff]
        %v342 = vld [vmem:[%s244 + $0x140] sm:$0xff]
        %v343 = vld [vmem:[%s244 + $0x148] sm:$0xff]
        %v344 = vld [vmem:[%s244 + $0x150] sm:$0xff]
        %v345 = vld [vmem:[%s244 + $0x158] sm:$0xff]
        %v346 = vld [vmem:[%s244 + $0x160] sm:$0xff]
        %v347 = vld [vmem:[%s244 + $0x168] sm:$0xff]
        %v348 = vld [vmem:[%s244 + $0x170] sm:$0xff]
        %v349 = vld [vmem:[%s244 + $0x178] sm:$0xff]
        %v350 = vld [vmem:[%s244 + $0x180] sm:$0xff]
        %v351 = vld [vmem:[%s244 + $0x188] sm:$0xff]
        %v352 = vld [vmem:[%s244 + $0x190] sm:$0xff]
        %v353 = vld [vmem:[%s244 + $0x198] sm:$0xff]
        %v354 = vld [vmem:[%s244 + $0x1a0] sm:$0xff]
        %v355 = vld [vmem:[%s244 + $0x1a8] sm:$0xff]
        %v356 = vld [vmem:[%s244 + $0x1b0] sm:$0xff]
        %v357 = vld [vmem:[%s244 + $0x1b8] sm:$0xff]
        %v358 = vld [vmem:[%s244 + $0x1c0] sm:$0xff]
        %v359 = vld [vmem:[%s244 + $0x1c8] sm:$0xff]
        %v360 = vld [vmem:[%s244 + $0x1d0] sm:$0xff]
        %v361 = vld [vmem:[%s244 + $0x1d8] sm:$0xff]
        %v362 = vld [vmem:[%s244 + $0x1e0] sm:$0xff]
        %v363 = vld [vmem:[%s244 + $0x1e8] sm:$0xff]
        %v364 = vld [vmem:[%s244 + $0x1f0] sm:$0xff]
        %v365 = vld [vmem:[%s244 + $0x1f8] sm:$0xff]
        %v366 = vld [vmem:[%s244 + $0x200] sm:$0xff]
        %v367 = vld [vmem:[%s244 + $0x208] sm:$0xff]
        %v368 = vld [vmem:[%s244 + $0x210] sm:$0xff]
        %v369 = vld [vmem:[%s244 + $0x218] sm:$0xff]
        %v370 = vld [vmem:[%s244 + $0x220] sm:$0xff]
        %v371 = vld [vmem:[%s244 + $0x228] sm:$0xff]
        %v372 = vld [vmem:[%s244 + $0x230] sm:$0xff]
        %v373 = vld [vmem:[%s244 + $0x238] sm:$0xff]
        %v374 = vld [vmem:[%s244 + $0x240] sm:$0xff]
        %v375 = vld [vmem:[%s244 + $0x248] sm:$0xff]
        %v376 = vld [vmem:[%s244 + $0x250] sm:$0xff]
        %v377 = vld [vmem:[%s244 + $0x258] sm:$0xff]
        %v378 = vld [vmem:[%s244 + $0x260] sm:$0xff]
        %v379 = vld [vmem:[%s244 + $0x268] sm:$0xff]
        %v380 = vld [vmem:[%s244 + $0x270] sm:$0xff]
        %v381 = vld [vmem:[%s244 + $0x278] sm:$0xff]
        %v382 = vld [vmem:[%s244 + $0x280] sm:$0xff]
        %v383 = vld [vmem:[%s244 + $0x288] sm:$0xff]
        %v384 = vld [vmem:[%s244 + $0x290] sm:$0xff]
        %v385 = vld [vmem:[%s244 + $0x298] sm:$0xff]
        %v386 = vld [vmem:[%s244 + $0x2a0] sm:$0xff]
        %v387 = vld [vmem:[%s244 + $0x2a8] sm:$0xff]
        %v388 = vld [vmem:[%s244 + $0x2b0] sm:$0xff]
        %v389 = vld [vmem:[%s244 + $0x2b8] sm:$0xff]
        %v390 = vld [vmem:[%s244 + $0x2c0] sm:$0xff]
        %v391 = vld [vmem:[%s244 + $0x2c8] sm:$0xff]
        %v392 = vld [vmem:[%s244 + $0x2d0] sm:$0xff]
        %v393 = vld [vmem:[%s244 + $0x2d8] sm:$0xff]
        %v394 = vld [vmem:[%s244 + $0x2e0] sm:$0xff]
        %v395 = vld [vmem:[%s244 + $0x2e8] sm:$0xff]
        %v396 = vld [vmem:[%s244 + $0x2f0] sm:$0xff]
        %v397 = vld [vmem:[%s244 + $0x2f8] sm:$0xff]
        %v398 = vld [vmem:[%s244 + $0x300] sm:$0xff]
        %v399 = vld [vmem:[%s244 + $0x308] sm:$0xff]
        %v400 = vld [vmem:[%s244 + $0x310] sm:$0xff]
        %v401 = vld [vmem:[%s244 + $0x318] sm:$0xff]
        %v402 = vld [vmem:[%s244 + $0x320] sm:$0xff]
        %v403 = vld [vmem:[%s244 + $0x328] sm:$0xff]
        %v404 = vld [vmem:[%s244 + $0x330] sm:$0xff]
        %v405 = vld [vmem:[%s244 + $0x338] sm:$0xff]
        %v406 = vld [vmem:[%s244 + $0x340] sm:$0xff]
        %v407 = vld [vmem:[%s244 + $0x348] sm:$0xff]
        %v408 = vld [vmem:[%s244 + $0x350] sm:$0xff]
        %v409 = vld [vmem:[%s244 + $0x358] sm:$0xff]
        %v410 = vld [vmem:[%s244 + $0x360] sm:$0xff]
        %v411 = vld [vmem:[%s244 + $0x368] sm:$0xff]
        %v412 = vld [vmem:[%s244 + $0x370] sm:$0xff]
        %v413 = vld [vmem:[%s244 + $0x378] sm:$0xff]
        %v414 = vld [vmem:[%s244 + $0x380] sm:$0xff]
        %v415 = vld [vmem:[%s244 + $0x388] sm:$0xff]
        %v416 = vld [vmem:[%s244 + $0x390] sm:$0xff]
        %v417 = vld [vmem:[%s244 + $0x398] sm:$0xff]
        %v418 = vld [vmem:[%s244 + $0x3a0] sm:$0xff]
        %v419 = vld [vmem:[%s244 + $0x3a8] sm:$0xff]
        %v420 = vld [vmem:[%s244 + $0x3b0] sm:$0xff]
        %v421 = vld [vmem:[%s244 + $0x3b8] sm:$0xff]
        %v422 = vld [vmem:[%s244 + $0x3c0] sm:$0xff]
        %v423 = vld [vmem:[%s244 + $0x3c8] sm:$0xff]
        %v424 = vld [vmem:[%s244 + $0x3d0] sm:$0xff]
        %v425 = vld [vmem:[%s244 + $0x3d8] sm:$0xff]
        %v426 = vld [vmem:[%s244 + $0x3e0] sm:$0xff]
        %v427 = vld [vmem:[%s244 + $0x3e8] sm:$0xff]
        %v428 = vld [vmem:[%s244 + $0x3f0] sm:$0xff]
        %v429 = vld [vmem:[%s244 + $0x3f8] sm:$0xff]
        %v430 = vld [vmem:[%s244 + $0x400] sm:$0xff]
        %v431 = vld [vmem:[%s244 + $0x408] sm:$0xff]
        %v432 = vld [vmem:[%s244 + $0x410] sm:$0xff]
        %v433 = vld [vmem:[%s244 + $0x418] sm:$0xff]
        %v434 = vld [vmem:[%s244 + $0x420] sm:$0xff]
        %v435 = vld [vmem:[%s244 + $0x428] sm:$0xff]
        %v436 = vld [vmem:[%s244 + $0x430] sm:$0xff]
        %v437 = vld [vmem:[%s244 + $0x438] sm:$0xff]
        %v438 = vld [vmem:[%s244 + $0x440] sm:$0xff]
        %v439 = vld [vmem:[%s244 + $0x448] sm:$0xff]
        %v440 = vld [vmem:[%s244 + $0x450] sm:$0xff]
        %v441 = vld [vmem:[%s244 + $0x458] sm:$0xff]
        %v442 = vld [vmem:[%s244 + $0x460] sm:$0xff]
        %v443 = vld [vmem:[%s244 + $0x468] sm:$0xff]
        %v444 = vld [vmem:[%s244 + $0x470] sm:$0xff]
        %v445 = vld [vmem:[%s244 + $0x478] sm:$0xff]
        %v446 = vld [vmem:[%s244 + $0x480] sm:$0xff]
        %v447 = vld [vmem:[%s244 + $0x488] sm:$0xff]
        %v448 = vld [vmem:[%s244 + $0x490] sm:$0xff]
        %v449 = vld [vmem:[%s244 + $0x498] sm:$0xff]
        %v450 = vld [vmem:[%s244 + $0x4a0] sm:$0xff]
        %v451 = vld [vmem:[%s244 + $0x4a8] sm:$0xff]
        %v452 = vld [vmem:[%s244 + $0x4b0] sm:$0xff]
        %v453 = vld [vmem:[%s244 + $0x4b8] sm:$0xff]
        %v454 = vld [vmem:[%s244 + $0x4c0] sm:$0xff]
        %v455 = vld [vmem:[%s244 + $0x4c8] sm:$0xff]
        %v456 = vld [vmem:[%s244 + $0x4d0] sm:$0xff]
        %v457 = vld [vmem:[%s244 + $0x4d8] sm:$0xff]
        %v458 = vld [vmem:[%s244 + $0x4e0] sm:$0xff]
        %v459 = vld [vmem:[%s244 + $0x4e8] sm:$0xff]
        %v460 = vld [vmem:[%s244 + $0x4f0] sm:$0xff]
        %v461 = vld [vmem:[%s244 + $0x4f8] sm:$0xff]
        %v462 = vld [vmem:[%s244 + $0x500] sm:$0xff]
        %v463 = vld [vmem:[%s244 + $0x508] sm:$0xff]
        %v464 = vld [vmem:[%s244 + $0x510] sm:$0xff]
        %v465 = vld [vmem:[%s244 + $0x518] sm:$0xff]
        %v466 = vld [vmem:[%s244 + $0x520] sm:$0xff]
        %v467 = vld [vmem:[%s244 + $0x528] sm:$0xff]
        %v468 = vld [vmem:[%s244 + $0x530] sm:$0xff]
        %v469 = vld [vmem:[%s244 + $0x538] sm:$0xff]
        %v470 = vld [vmem:[%s244 + $0x540] sm:$0xff]
        %v471 = vld [vmem:[%s244 + $0x548] sm:$0xff]
        %v472 = vld [vmem:[%s244 + $0x550] sm:$0xff]
        %v473 = vld [vmem:[%s244 + $0x558] sm:$0xff]
        %v474 = vld [vmem:[%s244 + $0x560] sm:$0xff]
        %v475 = vld [vmem:[%s244 + $0x568] sm:$0xff]
        %v476 = vld [vmem:[%s244 + $0x570] sm:$0xff]
        %v477 = vld [vmem:[%s244 + $0x578] sm:$0xff]
        %v478 = vld [vmem:[%s244 + $0x580] sm:$0xff]
        %v479 = vld [vmem:[%s244 + $0x588] sm:$0xff]
        %v480 = vld [vmem:[%s244 + $0x590] sm:$0xff]
        %v481 = vld [vmem:[%s244 + $0x598] sm:$0xff]
        %v482 = vld [vmem:[%s244 + $0x5a0] sm:$0xff]
        %v483 = vld [vmem:[%s244 + $0x5a8] sm:$0xff]
        %v484 = vld [vmem:[%s244 + $0x5b0] sm:$0xff]
        %v485 = vld [vmem:[%s244 + $0x5b8] sm:$0xff]
        %v486 = vld [vmem:[%s244 + $0x5c0] sm:$0xff]
        %v487 = vld [vmem:[%s244 + $0x5c8] sm:$0xff]
        %v488 = vld [vmem:[%s244 + $0x5d0] sm:$0xff]
        %v489 = vld [vmem:[%s244 + $0x5d8] sm:$0xff]
        %v490 = vld [vmem:[%s244 + $0x5e0] sm:$0xff]
        %v491 = vld [vmem:[%s244 + $0x5e8] sm:$0xff]
        %v492 = vld [vmem:[%s244 + $0x5f0] sm:$0xff]
        %v493 = vld [vmem:[%s244 + $0x5f8] sm:$0xff]
        %v494 = vld [vmem:[%s244 + $0x600] sm:$0xff]
        %v495 = vld [vmem:[%s244 + $0x608] sm:$0xff]
        %v496 = vld [vmem:[%s244 + $0x610] sm:$0xff]
        %v497 = vld [vmem:[%s244 + $0x618] sm:$0xff]
        %v498 = vld [vmem:[%s244 + $0x620] sm:$0xff]
        %v499 = vld [vmem:[%s244 + $0x628] sm:$0xff]
        %v500 = vld [vmem:[%s244 + $0x630] sm:$0xff]
        %v501 = vld [vmem:[%s244 + $0x638] sm:$0xff]
        %v502 = vld [vmem:[%s244 + $0x640] sm:$0xff]
        %v503 = vld [vmem:[%s244 + $0x648] sm:$0xff]
        %v504 = vld [vmem:[%s244 + $0x650] sm:$0xff]
        %v505 = vld [vmem:[%s244 + $0x658] sm:$0xff]
        %v506 = vld [vmem:[%s244 + $0x660] sm:$0xff]
        %v507 = vld [vmem:[%s244 + $0x668] sm:$0xff]
        %v508 = vld [vmem:[%s244 + $0x670] sm:$0xff]
        %v509 = vld [vmem:[%s244 + $0x678] sm:$0xff]
        %v510 = vld [vmem:[%s244 + $0x680] sm:$0xff]
        %v511 = vld [vmem:[%s244 + $0x688] sm:$0xff]
        %v512 = vld [vmem:[%s244 + $0x690] sm:$0xff]
        %v513 = vld [vmem:[%s244 + $0x698] sm:$0xff]
        %v514 = vld [vmem:[%s244 + $0x6a0] sm:$0xff]
        %v515 = vld [vmem:[%s244 + $0x6a8] sm:$0xff]
        %v516 = vld [vmem:[%s244 + $0x6b0] sm:$0xff]
        %v517 = vld [vmem:[%s244 + $0x6b8] sm:$0xff]
        %v518 = vld [vmem:[%s244 + $0x6c0] sm:$0xff]
        %v519 = vld [vmem:[%s244 + $0x6c8] sm:$0xff]
        %v520 = vld [vmem:[%s244 + $0x6d0] sm:$0xff]
        %v521 = vld [vmem:[%s244 + $0x6d8] sm:$0xff]
        %v522 = vld [vmem:[%s244 + $0x6e0] sm:$0xff]
        %v523 = vld [vmem:[%s244 + $0x6e8] sm:$0xff]
        %v524 = vld [vmem:[%s244 + $0x6f0] sm:$0xff]
        %v525 = vld [vmem:[%s244 + $0x6f8] sm:$0xff]
        %v526 = vld [vmem:[%s244 + $0x700] sm:$0xff]
        %v527 = vld [vmem:[%s244 + $0x708] sm:$0xff]
        %v528 = vld [vmem:[%s244 + $0x710] sm:$0xff]
        %v529 = vld [vmem:[%s244 + $0x718] sm:$0xff]
        %v530 = vld [vmem:[%s244 + $0x720] sm:$0xff]
        %v531 = vld [vmem:[%s244 + $0x728] sm:$0xff]
        %v532 = vld [vmem:[%s244 + $0x730] sm:$0xff]
        %v533 = vld [vmem:[%s244 + $0x738] sm:$0xff]
        %v534 = vld [vmem:[%s244 + $0x740] sm:$0xff]
        %v535 = vld [vmem:[%s244 + $0x748] sm:$0xff]
        %v536 = vld [vmem:[%s244 + $0x750] sm:$0xff]
        %v537 = vld [vmem:[%s244 + $0x758] sm:$0xff]
        %v538 = vld [vmem:[%s244 + $0x760] sm:$0xff]
        %v539 = vld [vmem:[%s244 + $0x768] sm:$0xff]
        %v540 = vld [vmem:[%s244 + $0x770] sm:$0xff]
        %v541 = vld [vmem:[%s244 + $0x778] sm:$0xff]
        %v542 = vld [vmem:[%s244 + $0x780] sm:$0xff]
        %v543 = vld [vmem:[%s244 + $0x788] sm:$0xff]
        %v544 = vld [vmem:[%s244 + $0x790] sm:$0xff]
        %v545 = vld [vmem:[%s244 + $0x798] sm:$0xff]
        %v546 = vld [vmem:[%s244 + $0x7a0] sm:$0xff]
        %v547 = vld [vmem:[%s244 + $0x7a8] sm:$0xff]
        %v548 = vld [vmem:[%s244 + $0x7b0] sm:$0xff]
        %v549 = vld [vmem:[%s244 + $0x7b8] sm:$0xff]
        %v550 = vld [vmem:[%s244 + $0x7c0] sm:$0xff]
        %v551 = vld [vmem:[%s244 + $0x7c8] sm:$0xff]
        %v552 = vld [vmem:[%s244 + $0x7d0] sm:$0xff]
        %v553 = vld [vmem:[%s244 + $0x7d8] sm:$0xff]
        %v554 = vld [vmem:[%s244 + $0x7e0] sm:$0xff]
        %v555 = vld [vmem:[%s244 + $0x7e8] sm:$0xff]
        %v556 = vld [vmem:[%s244 + $0x7f0] sm:$0xff]
        %v557 = vld [vmem:[%s244 + $0x7f8] sm:$0xff]
        %v558 = vld [vmem:[%s244 + $0x800] sm:$0xff]
        %v559 = vld [vmem:[%s244 + $0x808] sm:$0xff]
        %v560 = vld [vmem:[%s244 + $0x810] sm:$0xff]
        %v561 = vld [vmem:[%s244 + $0x818] sm:$0xff]
        %v562 = vld [vmem:[%s244 + $0x820] sm:$0xff]
        %v563 = vld [vmem:[%s244 + $0x828] sm:$0xff]
        %v564 = vld [vmem:[%s244 + $0x830] sm:$0xff]
        %v565 = vld [vmem:[%s244 + $0x838] sm:$0xff]
        %v566 = vld [vmem:[%s244 + $0x840] sm:$0xff]
        %v567 = vld [vmem:[%s244 + $0x848] sm:$0xff]
        %v568 = vld [vmem:[%s244 + $0x850] sm:$0xff]
        %v569 = vld [vmem:[%s244 + $0x858] sm:$0xff]
        %v570 = vld [vmem:[%s244 + $0x860] sm:$0xff]
        %v571 = vld [vmem:[%s244 + $0x868] sm:$0xff]
        %v572 = vld [vmem:[%s244 + $0x870] sm:$0xff]
        %v573 = vld [vmem:[%s244 + $0x878] sm:$0xff]
        %v574 = vld [vmem:[%s244 + $0x880] sm:$0xff]
        %v575 = vld [vmem:[%s244 + $0x888] sm:$0xff]
        %v576 = vld [vmem:[%s244 + $0x890] sm:$0xff]
        %v577 = vld [vmem:[%s244 + $0x898] sm:$0xff]
        %v578 = vld [vmem:[%s244 + $0x8a0] sm:$0xff]
        %v579 = vld [vmem:[%s244 + $0x8a8] sm:$0xff]
        %v580 = vld [vmem:[%s244 + $0x8b0] sm:$0xff]
        %v581 = vld [vmem:[%s244 + $0x8b8] sm:$0xff]
        %v582 = vld [vmem:[%s244 + $0x8c0] sm:$0xff]
        %v583 = vld [vmem:[%s244 + $0x8c8] sm:$0xff]
        %v584 = vld [vmem:[%s244 + $0x8d0] sm:$0xff]
        %v585 = vld [vmem:[%s244 + $0x8d8] sm:$0xff]
        %v586 = vld [vmem:[%s244 + $0x8e0] sm:$0xff]
        %v587 = vld [vmem:[%s244 + $0x8e8] sm:$0xff]
        %v588 = vld [vmem:[%s244 + $0x8f0] sm:$0xff]
        %v589 = vld [vmem:[%s244 + $0x8f8] sm:$0xff]
        %v590 = vld [vmem:[%s244 + $0x900] sm:$0xff]
        %v591 = vld [vmem:[%s244 + $0x908] sm:$0xff]
        %v592 = vld [vmem:[%s244 + $0x910] sm:$0xff]
        %v593 = vld [vmem:[%s244 + $0x918] sm:$0xff]
        %v594 = vld [vmem:[%s244 + $0x920] sm:$0xff]
        %v595 = vld [vmem:[%s244 + $0x928] sm:$0xff]
        %v596 = vld [vmem:[%s244 + $0x930] sm:$0xff]
        %v597 = vld [vmem:[%s244 + $0x938] sm:$0xff]
        %v598 = vld [vmem:[%s244 + $0x940] sm:$0xff]
        %v599 = vld [vmem:[%s244 + $0x948] sm:$0xff]
        %v600 = vld [vmem:[%s244 + $0x950] sm:$0xff]
        %v601 = vld [vmem:[%s244 + $0x958] sm:$0xff]
        %v602 = vld [vmem:[%s244 + $0x960] sm:$0xff]
        %v603 = vld [vmem:[%s244 + $0x968] sm:$0xff]
        %v604 = vld [vmem:[%s244 + $0x970] sm:$0xff]
        %v605 = vld [vmem:[%s244 + $0x978] sm:$0xff]
        %v606 = vld [vmem:[%s244 + $0x980] sm:$0xff]
        %v607 = vld [vmem:[%s244 + $0x988] sm:$0xff]
        %v608 = vld [vmem:[%s244 + $0x990] sm:$0xff]
        %v609 = vld [vmem:[%s244 + $0x998] sm:$0xff]
        %v610 = vld [vmem:[%s244 + $0x9a0] sm:$0xff]
        %v611 = vld [vmem:[%s244 + $0x9a8] sm:$0xff]
        %v612 = vld [vmem:[%s244 + $0x9b0] sm:$0xff]
        %v613 = vld [vmem:[%s244 + $0x9b8] sm:$0xff]
        %v614 = vld [vmem:[%s244 + $0x9c0] sm:$0xff]
        %v615 = vld [vmem:[%s244 + $0x9c8] sm:$0xff]
        %v616 = vld [vmem:[%s244 + $0x9d0] sm:$0xff]
        %v617 = vld [vmem:[%s244 + $0x9d8] sm:$0xff]
        %v618 = vld [vmem:[%s244 + $0x9e0] sm:$0xff]
        %v619 = vld [vmem:[%s244 + $0x9e8] sm:$0xff]
        %v620 = vld [vmem:[%s244 + $0x9f0] sm:$0xff]
        %v621 = vld [vmem:[%s244 + $0x9f8] sm:$0xff]
        %v622 = vld [vmem:[%s244 + $0xa00] sm:$0xff]
        %v623 = vld [vmem:[%s244 + $0xa08] sm:$0xff]
        %v624 = vld [vmem:[%s244 + $0xa10] sm:$0xff]
        %v625 = vld [vmem:[%s244 + $0xa18] sm:$0xff]
        %v626 = vld [vmem:[%s244 + $0xa20] sm:$0xff]
        %v627 = vld [vmem:[%s244 + $0xa28] sm:$0xff]
        %v628 = vld [vmem:[%s244 + $0xa30] sm:$0xff]
        %v629 = vld [vmem:[%s244 + $0xa38] sm:$0xff]
        %v630 = vld [vmem:[%s244 + $0xa40] sm:$0xff]
        %v631 = vld [vmem:[%s244 + $0xa48] sm:$0xff]
        %v632 = vld [vmem:[%s244 + $0xa50] sm:$0xff]
        %v633 = vld [vmem:[%s244 + $0xa58] sm:$0xff]
        %v634 = vld [vmem:[%s244 + $0xa60] sm:$0xff]
        %v635 = vld [vmem:[%s244 + $0xa68] sm:$0xff]
        %v636 = vld [vmem:[%s244 + $0xa70] sm:$0xff]
        %v637 = vld [vmem:[%s244 + $0xa78] sm:$0xff]
        %v638 = vld [vmem:[%s244 + $0xa80] sm:$0xff]
        %v639 = vld [vmem:[%s244 + $0xa88] sm:$0xff]
        %v640 = vld [vmem:[%s244 + $0xa90] sm:$0xff]
        %v641 = vld [vmem:[%s244 + $0xa98] sm:$0xff]
        %v642 = vld [vmem:[%s244 + $0xaa0] sm:$0xff]
        %v643 = vld [vmem:[%s244 + $0xaa8] sm:$0xff]
        %v644 = vld [vmem:[%s244 + $0xab0] sm:$0xff]
        %v645 = vld [vmem:[%s244 + $0xab8] sm:$0xff]
        %v646 = vld [vmem:[%s244 + $0xac0] sm:$0xff]
        %v647 = vld [vmem:[%s244 + $0xac8] sm:$0xff]
        %v648 = vld [vmem:[%s244 + $0xad0] sm:$0xff]
        %v649 = vld [vmem:[%s244 + $0xad8] sm:$0xff]
        %v650 = vld [vmem:[%s244 + $0xae0] sm:$0xff]
        %v651 = vld [vmem:[%s244 + $0xae8] sm:$0xff]
        %v652 = vld [vmem:[%s244 + $0xaf0] sm:$0xff]
        %v653 = vld [vmem:[%s244 + $0xaf8] sm:$0xff]
        %v654 = vld [vmem:[%s244 + $0xb00] sm:$0xff]
        %v655 = vld [vmem:[%s244 + $0xb08] sm:$0xff]
        %v656 = vld [vmem:[%s244 + $0xb10] sm:$0xff]
        %v657 = vld [vmem:[%s244 + $0xb18] sm:$0xff]
        %v658 = vld [vmem:[%s244 + $0xb20] sm:$0xff]
        %v659 = vld [vmem:[%s244 + $0xb28] sm:$0xff]
        %v660 = vld [vmem:[%s244 + $0xb30] sm:$0xff]
        %v661 = vld [vmem:[%s244 + $0xb38] sm:$0xff]
        %v662 = vld [vmem:[%s244 + $0xb40] sm:$0xff]
        %v663 = vld [vmem:[%s244 + $0xb48] sm:$0xff]
        %v664 = vld [vmem:[%s244 + $0xb50] sm:$0xff]
        %v665 = vld [vmem:[%s244 + $0xb58] sm:$0xff]
        %v666 = vld [vmem:[%s244 + $0xb60] sm:$0xff]
        %v667 = vld [vmem:[%s244 + $0xb68] sm:$0xff]
        %v668 = vld [vmem:[%s244 + $0xb70] sm:$0xff]
        %v669 = vld [vmem:[%s244 + $0xb78] sm:$0xff]
        %v670 = vld [vmem:[%s244 + $0xb80] sm:$0xff]
        %v671 = vld [vmem:[%s244 + $0xb88] sm:$0xff]
        %v672 = vld [vmem:[%s244 + $0xb90] sm:$0xff]
        %v673 = vld [vmem:[%s244 + $0xb98] sm:$0xff]
        %v674 = vld [vmem:[%s244 + $0xba0] sm:$0xff]
        %v675 = vld [vmem:[%s244 + $0xba8] sm:$0xff]
        %v676 = vld [vmem:[%s244 + $0xbb0] sm:$0xff]
        %v677 = vld [vmem:[%s244 + $0xbb8] sm:$0xff]
        %v678 = vld [vmem:[%s244 + $0xbc0] sm:$0xff]
        %v679 = vld [vmem:[%s244 + $0xbc8] sm:$0xff]
        %v680 = vld [vmem:[%s244 + $0xbd0] sm:$0xff]
        %v681 = vld [vmem:[%s244 + $0xbd8] sm:$0xff]
        %v682 = vld [vmem:[%s244 + $0xbe0] sm:$0xff]
        %v683 = vld [vmem:[%s244 + $0xbe8] sm:$0xff]
        %v684 = vld [vmem:[%s244 + $0xbf0] sm:$0xff]
        %v685 = vld [vmem:[%s244 + $0xbf8] sm:$0xff]
        %686 = vmatpush.msra.mxu0 %v362
        %687 = vmatpush.msra.mxu0 %v358
        %688 = vmatpush.msra.mxu0 %v354
        %689 = vmatpush.msra.mxu0 %v350
        %690 = vmatpush.msra.mxu0 %v346
        %691 = vmatpush.msra.mxu0 %v342
        %692 = vmatpush.msra.mxu0 %v338
        %693 = vmatpush.msra.mxu0 %v334
        %694 = vmatpush.msra.mxu0 %v330
        %695 = vmatpush.msra.mxu0 %v326
        %696 = vmatpush.msra.mxu0 %v322
        %697 = vmatpush.msra.mxu0 %v318
        %698 = vmatpush.msra.mxu0 %v314
        %699 = vmatpush.msra.mxu0 %v310
        %700 = vmatpush.msra.mxu0 %v306
        %701 = vmatpush.msra.mxu0 %v302
        %702 = vmatmul.f32.gmra.mxu0 %v278
        %v703 = vpop.f32.mrf.mxu0
        %v704 = vadd.f32 0.0, %v703
        %705 = vmatmul.f32.gmra.mxu0 %v284
        %v706 = vpop.f32.mrf.mxu0
        %v707 = vadd.f32 0.0, %v706
        %708 = vmatmul.f32.gmra.mxu0 %v290
        %v709 = vpop.f32.mrf.mxu0
        %v710 = vadd.f32 0.0, %v709
        %711 = vmatmul.f32.gmra.mxu0 %v296
        %v712 = vpop.f32.mrf.mxu0
        %v713 = vadd.f32 0.0, %v712
        %714 = vdwg.mxu0
        %715 = vmatpush.msra.mxu0 %v426
        %716 = vmatpush.msra.mxu0 %v422
        %717 = vmatpush.msra.mxu0 %v418
        %718 = vmatpush.msra.mxu0 %v414
        %719 = vmatpush.msra.mxu0 %v410
        %720 = vmatpush.msra.mxu0 %v406
        %721 = vmatpush.msra.mxu0 %v402
        %722 = vmatpush.msra.mxu0 %v398
        %723 = vmatpush.msra.mxu0 %v394
        %724 = vmatpush.msra.mxu0 %v390
        %725 = vmatpush.msra.mxu0 %v386
        %726 = vmatpush.msra.mxu0 %v382
        %727 = vmatpush.msra.mxu0 %v378
        %728 = vmatpush.msra.mxu0 %v374
        %729 = vmatpush.msra.mxu0 %v370
        %730 = vmatpush.msra.mxu0 %v366
        %731 = vmatmul.f32.gmra.mxu0 %v279
        %v732 = vpop.f32.mrf.mxu0
        %v733 = vadd.f32 %v704, %v732
        %734 = vmatmul.f32.gmra.mxu0 %v285
        %v735 = vpop.f32.mrf.mxu0
        %v736 = vadd.f32 %v707, %v735
        %737 = vmatmul.f32.gmra.mxu0 %v291
        %v738 = vpop.f32.mrf.mxu0
        %v739 = vadd.f32 %v710, %v738
        %740 = vmatmul.f32.gmra.mxu0 %v297
        %v741 = vpop.f32.mrf.mxu0
        %v742 = vadd.f32 %v713, %v741
        %743 = vdwg.mxu0
        %744 = vmatpush.msra.mxu0 %v490
        %745 = vmatpush.msra.mxu0 %v486
        %746 = vmatpush.msra.mxu0 %v482
        %747 = vmatpush.msra.mxu0 %v478
        %748 = vmatpush.msra.mxu0 %v474
        %749 = vmatpush.msra.mxu0 %v470
        %750 = vmatpush.msra.mxu0 %v466
        %751 = vmatpush.msra.mxu0 %v462
        %752 = vmatpush.msra.mxu0 %v458
        %753 = vmatpush.msra.mxu0 %v454
        %754 = vmatpush.msra.mxu0 %v450
        %755 = vmatpush.msra.mxu0 %v446
        %756 = vmatpush.msra.mxu0 %v442
        %757 = vmatpush.msra.mxu0 %v438
        %758 = vmatpush.msra.mxu0 %v434
        %759 = vmatpush.msra.mxu0 %v430
        %760 = vmatmul.f32.gmra.mxu0 %v280
        %v761 = vpop.f32.mrf.mxu0
        %v762 = vadd.f32 %v733, %v761
        %763 = vmatmul.f32.gmra.mxu0 %v286
        %v764 = vpop.f32.mrf.mxu0
        %v765 = vadd.f32 %v736, %v764
        %766 = vmatmul.f32.gmra.mxu0 %v292
        %v767 = vpop.f32.mrf.mxu0
        %v768 = vadd.f32 %v739, %v767
        %769 = vmatmul.f32.gmra.mxu0 %v298
        %v770 = vpop.f32.mrf.mxu0
        %v771 = vadd.f32 %v742, %v770
        %772 = vdwg.mxu0
        %773 = vmatpush.msra.mxu0 %v554
        %774 = vmatpush.msra.mxu0 %v550
        %775 = vmatpush.msra.mxu0 %v546
        %776 = vmatpush.msra.mxu0 %v542
        %777 = vmatpush.msra.mxu0 %v538
        %778 = vmatpush.msra.mxu0 %v534
        %779 = vmatpush.msra.mxu0 %v530
        %780 = vmatpush.msra.mxu0 %v526
        %781 = vmatpush.msra.mxu0 %v522
        %782 = vmatpush.msra.mxu0 %v518
        %783 = vmatpush.msra.mxu0 %v514
        %784 = vmatpush.msra.mxu0 %v510
        %785 = vmatpush.msra.mxu0 %v506
        %786 = vmatpush.msra.mxu0 %v502
        %787 = vmatpush.msra.mxu0 %v498
        %788 = vmatpush.msra.mxu0 %v494
        %789 = vmatmul.f32.gmra.mxu0 %v281
        %v790 = vpop.f32.mrf.mxu0
        %v791 = vadd.f32 %v762, %v790
        %792 = vmatmul.f32.gmra.mxu0 %v287
        %v793 = vpop.f32.mrf.mxu0
        %v794 = vadd.f32 %v765, %v793
        %795 = vmatmul.f32.gmra.mxu0 %v293
        %v796 = vpop.f32.mrf.mxu0
        %v797 = vadd.f32 %v768, %v796
        %798 = vmatmul.f32.gmra.mxu0 %v299
        %v799 = vpop.f32.mrf.mxu0
        %v800 = vadd.f32 %v771, %v799
        %801 = vdwg.mxu0
        %802 = vmatpush.msra.mxu0 %v618
        %803 = vmatpush.msra.mxu0 %v614
        %804 = vmatpush.msra.mxu0 %v610
        %805 = vmatpush.msra.mxu0 %v606
        %806 = vmatpush.msra.mxu0 %v602
        %807 = vmatpush.msra.mxu0 %v598
        %808 = vmatpush.msra.mxu0 %v594
        %809 = vmatpush.msra.mxu0 %v590
        %810 = vmatpush.msra.mxu0 %v586
        %811 = vmatpush.msra.mxu0 %v582
        %812 = vmatpush.msra.mxu0 %v578
        %813 = vmatpush.msra.mxu0 %v574
        %814 = vmatpush.msra.mxu0 %v570
        %815 = vmatpush.msra.mxu0 %v566
        %816 = vmatpush.msra.mxu0 %v562
        %817 = vmatpush.msra.mxu0 %v558
        %818 = vmatmul.f32.gmra.mxu0 %v282
        %v819 = vpop.f32.mrf.mxu0
        %v820 = vadd.f32 %v791, %v819
        %821 = vmatmul.f32.gmra.mxu0 %v288
        %v822 = vpop.f32.mrf.mxu0
        %v823 = vadd.f32 %v794, %v822
        %824 = vmatmul.f32.gmra.mxu0 %v294
        %v825 = vpop.f32.mrf.mxu0
        %v826 = vadd.f32 %v797, %v825
        %827 = vmatmul.f32.gmra.mxu0 %v300
        %v828 = vpop.f32.mrf.mxu0
        %v829 = vadd.f32 %v800, %v828
        %830 = vdwg.mxu0
        %831 = vmatpush.msra.mxu0 %v682
        %832 = vmatpush.msra.mxu0 %v678
        %833 = vmatpush.msra.mxu0 %v674
        %834 = vmatpush.msra.mxu0 %v670
        %835 = vmatpush.msra.mxu0 %v666
        %836 = vmatpush.msra.mxu0 %v662
        %837 = vmatpush.msra.mxu0 %v658
        %838 = vmatpush.msra.mxu0 %v654
        %839 = vmatpush.msra.mxu0 %v650
        %840 = vmatpush.msra.mxu0 %v646
        %841 = vmatpush.msra.mxu0 %v642
        %842 = vmatpush.msra.mxu0 %v638
        %843 = vmatpush.msra.mxu0 %v634
        %844 = vmatpush.msra.mxu0 %v630
        %845 = vmatpush.msra.mxu0 %v626
        %846 = vmatpush.msra.mxu0 %v622
        %847 = vmatmul.f32.gmra.mxu0 %v283
        %v848 = vpop.f32.mrf.mxu0
        %v849 = vadd.f32 %v820, %v848
        %850 = vmatmul.f32.gmra.mxu0 %v289
        %v851 = vpop.f32.mrf.mxu0
        %v852 = vadd.f32 %v823, %v851
        %853 = vmatmul.f32.gmra.mxu0 %v295
        %v854 = vpop.f32.mrf.mxu0
        %v855 = vadd.f32 %v826, %v854
        %856 = vmatmul.f32.gmra.mxu0 %v301
        %v857 = vpop.f32.mrf.mxu0
        %v858 = vadd.f32 %v829, %v857
        %859 = vdwg.mxu0
        %860 = vmatpush.msra.mxu0 %v363
        %861 = vmatpush.msra.mxu0 %v359
        %862 = vmatpush.msra.mxu0 %v355
        %863 = vmatpush.msra.mxu0 %v351
        %864 = vmatpush.msra.mxu0 %v347
        %865 = vmatpush.msra.mxu0 %v343
        %866 = vmatpush.msra.mxu0 %v339
        %867 = vmatpush.msra.mxu0 %v335
        %868 = vmatpush.msra.mxu0 %v331
        %869 = vmatpush.msra.mxu0 %v327
        %870 = vmatpush.msra.mxu0 %v323
        %871 = vmatpush.msra.mxu0 %v319
        %872 = vmatpush.msra.mxu0 %v315
        %873 = vmatpush.msra.mxu0 %v311
        %874 = vmatpush.msra.mxu0 %v307
        %875 = vmatpush.msra.mxu0 %v303
        %876 = vmatmul.f32.gmra.mxu0 %v278
        %v877 = vpop.f32.mrf.mxu0
        %v878 = vadd.f32 0.0, %v877
        %879 = vmatmul.f32.gmra.mxu0 %v284
        %v880 = vpop.f32.mrf.mxu0
        %v881 = vadd.f32 0.0, %v880
        %882 = vmatmul.f32.gmra.mxu0 %v290
        %v883 = vpop.f32.mrf.mxu0
        %v884 = vadd.f32 0.0, %v883
        %885 = vmatmul.f32.gmra.mxu0 %v296
        %v886 = vpop.f32.mrf.mxu0
        %v887 = vadd.f32 0.0, %v886
        %888 = vdwg.mxu0
        %889 = vmatpush.msra.mxu0 %v427
        %890 = vmatpush.msra.mxu0 %v423
        %891 = vmatpush.msra.mxu0 %v419
        %892 = vmatpush.msra.mxu0 %v415
        %893 = vmatpush.msra.mxu0 %v411
        %894 = vmatpush.msra.mxu0 %v407
        %895 = vmatpush.msra.mxu0 %v403
        %896 = vmatpush.msra.mxu0 %v399
        %897 = vmatpush.msra.mxu0 %v395
        %898 = vmatpush.msra.mxu0 %v391
        %899 = vmatpush.msra.mxu0 %v387
        %900 = vmatpush.msra.mxu0 %v383
        %901 = vmatpush.msra.mxu0 %v379
        %902 = vmatpush.msra.mxu0 %v375
        %903 = vmatpush.msra.mxu0 %v371
        %904 = vmatpush.msra.mxu0 %v367
        %905 = vmatmul.f32.gmra.mxu0 %v279
        %v906 = vpop.f32.mrf.mxu0
        %v907 = vadd.f32 %v878, %v906
        %908 = vmatmul.f32.gmra.mxu0 %v285
        %v909 = vpop.f32.mrf.mxu0
        %v910 = vadd.f32 %v881, %v909
        %911 = vmatmul.f32.gmra.mxu0 %v291
        %v912 = vpop.f32.mrf.mxu0
        %v913 = vadd.f32 %v884, %v912
        %914 = vmatmul.f32.gmra.mxu0 %v297
        %v915 = vpop.f32.mrf.mxu0
        %v916 = vadd.f32 %v887, %v915
        %917 = vdwg.mxu0
        %918 = vmatpush.msra.mxu0 %v491
        %919 = vmatpush.msra.mxu0 %v487
        %920 = vmatpush.msra.mxu0 %v483
        %921 = vmatpush.msra.mxu0 %v479
        %922 = vmatpush.msra.mxu0 %v475
        %923 = vmatpush.msra.mxu0 %v471
        %924 = vmatpush.msra.mxu0 %v467
        %925 = vmatpush.msra.mxu0 %v463
        %926 = vmatpush.msra.mxu0 %v459
        %927 = vmatpush.msra.mxu0 %v455
        %928 = vmatpush.msra.mxu0 %v451
        %929 = vmatpush.msra.mxu0 %v447
        %930 = vmatpush.msra.mxu0 %v443
        %931 = vmatpush.msra.mxu0 %v439
        %932 = vmatpush.msra.mxu0 %v435
        %933 = vmatpush.msra.mxu0 %v431
        %934 = vmatmul.f32.gmra.mxu0 %v280
        %v935 = vpop.f32.mrf.mxu0
        %v936 = vadd.f32 %v907, %v935
        %937 = vmatmul.f32.gmra.mxu0 %v286
        %v938 = vpop.f32.mrf.mxu0
        %v939 = vadd.f32 %v910, %v938
        %940 = vmatmul.f32.gmra.mxu0 %v292
        %v941 = vpop.f32.mrf.mxu0
        %v942 = vadd.f32 %v913, %v941
        %943 = vmatmul.f32.gmra.mxu0 %v298
        %v944 = vpop.f32.mrf.mxu0
        %v945 = vadd.f32 %v916, %v944
        %946 = vdwg.mxu0
        %947 = vmatpush.msra.mxu0 %v555
        %948 = vmatpush.msra.mxu0 %v551
        %949 = vmatpush.msra.mxu0 %v547
        %950 = vmatpush.msra.mxu0 %v543
        %951 = vmatpush.msra.mxu0 %v539
        %952 = vmatpush.msra.mxu0 %v535
        %953 = vmatpush.msra.mxu0 %v531
        %954 = vmatpush.msra.mxu0 %v527
        %955 = vmatpush.msra.mxu0 %v523
        %956 = vmatpush.msra.mxu0 %v519
        %957 = vmatpush.msra.mxu0 %v515
        %958 = vmatpush.msra.mxu0 %v511
        %959 = vmatpush.msra.mxu0 %v507
        %960 = vmatpush.msra.mxu0 %v503
        %961 = vmatpush.msra.mxu0 %v499
        %962 = vmatpush.msra.mxu0 %v495
        %963 = vmatmul.f32.gmra.mxu0 %v281
        %v964 = vpop.f32.mrf.mxu0
        %v965 = vadd.f32 %v936, %v964
        %966 = vmatmul.f32.gmra.mxu0 %v287
        %v967 = vpop.f32.mrf.mxu0
        %v968 = vadd.f32 %v939, %v967
        %969 = vmatmul.f32.gmra.mxu0 %v293
        %v970 = vpop.f32.mrf.mxu0
        %v971 = vadd.f32 %v942, %v970
        %972 = vmatmul.f32.gmra.mxu0 %v299
        %v973 = vpop.f32.mrf.mxu0
        %v974 = vadd.f32 %v945, %v973
        %975 = vdwg.mxu0
        %976 = vmatpush.msra.mxu0 %v619
        %977 = vmatpush.msra.mxu0 %v615
        %978 = vmatpush.msra.mxu0 %v611
        %979 = vmatpush.msra.mxu0 %v607
        %980 = vmatpush.msra.mxu0 %v603
        %981 = vmatpush.msra.mxu0 %v599
        %982 = vmatpush.msra.mxu0 %v595
        %983 = vmatpush.msra.mxu0 %v591
        %984 = vmatpush.msra.mxu0 %v587
        %985 = vmatpush.msra.mxu0 %v583
        %986 = vmatpush.msra.mxu0 %v579
        %987 = vmatpush.msra.mxu0 %v575
        %988 = vmatpush.msra.mxu0 %v571
        %989 = vmatpush.msra.mxu0 %v567
        %990 = vmatpush.msra.mxu0 %v563
        %991 = vmatpush.msra.mxu0 %v559
        %992 = vmatmul.f32.gmra.mxu0 %v282
        %v993 = vpop.f32.mrf.mxu0
        %v994 = vadd.f32 %v965, %v993
        %995 = vmatmul.f32.gmra.mxu0 %v288
        %v996 = vpop.f32.mrf.mxu0
        %v997 = vadd.f32 %v968, %v996
        %998 = vmatmul.f32.gmra.mxu0 %v294
        %v999 = vpop.f32.mrf.mxu0
        %v1000 = vadd.f32 %v971, %v999
        %1001 = vmatmul.f32.gmra.mxu0 %v300
        %v1002 = vpop.f32.mrf.mxu0
        %v1003 = vadd.f32 %v974, %v1002
        %1004 = vdwg.mxu0
        %1005 = vmatpush.msra.mxu0 %v683
        %1006 = vmatpush.msra.mxu0 %v679
        %1007 = vmatpush.msra.mxu0 %v675
        %1008 = vmatpush.msra.mxu0 %v671
        %1009 = vmatpush.msra.mxu0 %v667
        %1010 = vmatpush.msra.mxu0 %v663
        %1011 = vmatpush.msra.mxu0 %v659
        %1012 = vmatpush.msra.mxu0 %v655
        %1013 = vmatpush.msra.mxu0 %v651
        %1014 = vmatpush.msra.mxu0 %v647
        %1015 = vmatpush.msra.mxu0 %v643
        %1016 = vmatpush.msra.mxu0 %v639
        %1017 = vmatpush.msra.mxu0 %v635
        %1018 = vmatpush.msra.mxu0 %v631
        %1019 = vmatpush.msra.mxu0 %v627
        %1020 = vmatpush.msra.mxu0 %v623
        %1021 = vmatmul.f32.gmra.mxu0 %v283
        %v1022 = vpop.f32.mrf.mxu0
        %v1023 = vadd.f32 %v994, %v1022
        %1024 = vmatmul.f32.gmra.mxu0 %v289
        %v1025 = vpop.f32.mrf.mxu0
        %v1026 = vadd.f32 %v997, %v1025
        %1027 = vmatmul.f32.gmra.mxu0 %v295
        %v1028 = vpop.f32.mrf.mxu0
        %v1029 = vadd.f32 %v1000, %v1028
        %1030 = vmatmul.f32.gmra.mxu0 %v301
        %v1031 = vpop.f32.mrf.mxu0
        %v1032 = vadd.f32 %v1003, %v1031
        %1033 = vdwg.mxu0
        %1034 = vmatpush.msra.mxu0 %v364
        %1035 = vmatpush.msra.mxu0 %v360
        %1036 = vmatpush.msra.mxu0 %v356
        %1037 = vmatpush.msra.mxu0 %v352
        %1038 = vmatpush.msra.mxu0 %v348
        %1039 = vmatpush.msra.mxu0 %v344
        %1040 = vmatpush.msra.mxu0 %v340
        %1041 = vmatpush.msra.mxu0 %v336
        %1042 = vmatpush.msra.mxu0 %v332
        %1043 = vmatpush.msra.mxu0 %v328
        %1044 = vmatpush.msra.mxu0 %v324
        %1045 = vmatpush.msra.mxu0 %v320
        %1046 = vmatpush.msra.mxu0 %v316
        %1047 = vmatpush.msra.mxu0 %v312
        %1048 = vmatpush.msra.mxu0 %v308
        %1049 = vmatpush.msra.mxu0 %v304
        %1050 = vmatmul.f32.gmra.mxu0 %v278
        %v1051 = vpop.f32.mrf.mxu0
        %v1052 = vadd.f32 0.0, %v1051
        %1053 = vmatmul.f32.gmra.mxu0 %v284
        %v1054 = vpop.f32.mrf.mxu0
        %v1055 = vadd.f32 0.0, %v1054
        %1056 = vmatmul.f32.gmra.mxu0 %v290
        %v1057 = vpop.f32.mrf.mxu0
        %v1058 = vadd.f32 0.0, %v1057
        %1059 = vmatmul.f32.gmra.mxu0 %v296
        %v1060 = vpop.f32.mrf.mxu0
        %v1061 = vadd.f32 0.0, %v1060
        %1062 = vdwg.mxu0
        %1063 = vmatpush.msra.mxu0 %v428
        %1064 = vmatpush.msra.mxu0 %v424
        %1065 = vmatpush.msra.mxu0 %v420
        %1066 = vmatpush.msra.mxu0 %v416
        %1067 = vmatpush.msra.mxu0 %v412
        %1068 = vmatpush.msra.mxu0 %v408
        %1069 = vmatpush.msra.mxu0 %v404
        %1070 = vmatpush.msra.mxu0 %v400
        %1071 = vmatpush.msra.mxu0 %v396
        %1072 = vmatpush.msra.mxu0 %v392
        %1073 = vmatpush.msra.mxu0 %v388
        %1074 = vmatpush.msra.mxu0 %v384
        %1075 = vmatpush.msra.mxu0 %v380
        %1076 = vmatpush.msra.mxu0 %v376
        %1077 = vmatpush.msra.mxu0 %v372
        %1078 = vmatpush.msra.mxu0 %v368
        %1079 = vmatmul.f32.gmra.mxu0 %v279
        %v1080 = vpop.f32.mrf.mxu0
        %v1081 = vadd.f32 %v1052, %v1080
        %1082 = vmatmul.f32.gmra.mxu0 %v285
        %v1083 = vpop.f32.mrf.mxu0
        %v1084 = vadd.f32 %v1055, %v1083
        %1085 = vmatmul.f32.gmra.mxu0 %v291
        %v1086 = vpop.f32.mrf.mxu0
        %v1087 = vadd.f32 %v1058, %v1086
        %1088 = vmatmul.f32.gmra.mxu0 %v297
        %v1089 = vpop.f32.mrf.mxu0
        %v1090 = vadd.f32 %v1061, %v1089
        %1091 = vdwg.mxu0
        %1092 = vmatpush.msra.mxu0 %v492
        %1093 = vmatpush.msra.mxu0 %v488
        %1094 = vmatpush.msra.mxu0 %v484
        %1095 = vmatpush.msra.mxu0 %v480
        %1096 = vmatpush.msra.mxu0 %v476
        %1097 = vmatpush.msra.mxu0 %v472
        %1098 = vmatpush.msra.mxu0 %v468
        %1099 = vmatpush.msra.mxu0 %v464
        %1100 = vmatpush.msra.mxu0 %v460
        %1101 = vmatpush.msra.mxu0 %v456
        %1102 = vmatpush.msra.mxu0 %v452
        %1103 = vmatpush.msra.mxu0 %v448
        %1104 = vmatpush.msra.mxu0 %v444
        %1105 = vmatpush.msra.mxu0 %v440
        %1106 = vmatpush.msra.mxu0 %v436
        %1107 = vmatpush.msra.mxu0 %v432
        %1108 = vmatmul.f32.gmra.mxu0 %v280
        %v1109 = vpop.f32.mrf.mxu0
        %v1110 = vadd.f32 %v1081, %v1109
        %1111 = vmatmul.f32.gmra.mxu0 %v286
        %v1112 = vpop.f32.mrf.mxu0
        %v1113 = vadd.f32 %v1084, %v1112
        %1114 = vmatmul.f32.gmra.mxu0 %v292
        %v1115 = vpop.f32.mrf.mxu0
        %v1116 = vadd.f32 %v1087, %v1115
        %1117 = vmatmul.f32.gmra.mxu0 %v298
        %v1118 = vpop.f32.mrf.mxu0
        %v1119 = vadd.f32 %v1090, %v1118
        %1120 = vdwg.mxu0
        %1121 = vmatpush.msra.mxu0 %v556
        %1122 = vmatpush.msra.mxu0 %v552
        %1123 = vmatpush.msra.mxu0 %v548
        %1124 = vmatpush.msra.mxu0 %v544
        %1125 = vmatpush.msra.mxu0 %v540
        %1126 = vmatpush.msra.mxu0 %v536
        %1127 = vmatpush.msra.mxu0 %v532
        %1128 = vmatpush.msra.mxu0 %v528
        %1129 = vmatpush.msra.mxu0 %v524
        %1130 = vmatpush.msra.mxu0 %v520
        %1131 = vmatpush.msra.mxu0 %v516
        %1132 = vmatpush.msra.mxu0 %v512
        %1133 = vmatpush.msra.mxu0 %v508
        %1134 = vmatpush.msra.mxu0 %v504
        %1135 = vmatpush.msra.mxu0 %v500
        %1136 = vmatpush.msra.mxu0 %v496
        %1137 = vmatmul.f32.gmra.mxu0 %v281
        %v1138 = vpop.f32.mrf.mxu0
        %v1139 = vadd.f32 %v1110, %v1138
        %1140 = vmatmul.f32.gmra.mxu0 %v287
        %v1141 = vpop.f32.mrf.mxu0
        %v1142 = vadd.f32 %v1113, %v1141
        %1143 = vmatmul.f32.gmra.mxu0 %v293
        %v1144 = vpop.f32.mrf.mxu0
        %v1145 = vadd.f32 %v1116, %v1144
        %1146 = vmatmul.f32.gmra.mxu0 %v299
        %v1147 = vpop.f32.mrf.mxu0
        %v1148 = vadd.f32 %v1119, %v1147
        %1149 = vdwg.mxu0
        %1150 = vmatpush.msra.mxu0 %v620
        %1151 = vmatpush.msra.mxu0 %v616
        %1152 = vmatpush.msra.mxu0 %v612
        %1153 = vmatpush.msra.mxu0 %v608
        %1154 = vmatpush.msra.mxu0 %v604
        %1155 = vmatpush.msra.mxu0 %v600
        %1156 = vmatpush.msra.mxu0 %v596
        %1157 = vmatpush.msra.mxu0 %v592
        %1158 = vmatpush.msra.mxu0 %v588
        %1159 = vmatpush.msra.mxu0 %v584
        %1160 = vmatpush.msra.mxu0 %v580
        %1161 = vmatpush.msra.mxu0 %v576
        %1162 = vmatpush.msra.mxu0 %v572
        %1163 = vmatpush.msra.mxu0 %v568
        %1164 = vmatpush.msra.mxu0 %v564
        %1165 = vmatpush.msra.mxu0 %v560
        %1166 = vmatmul.f32.gmra.mxu0 %v282
        %v1167 = vpop.f32.mrf.mxu0
        %v1168 = vadd.f32 %v1139, %v1167
        %1169 = vmatmul.f32.gmra.mxu0 %v288
        %v1170 = vpop.f32.mrf.mxu0
        %v1171 = vadd.f32 %v1142, %v1170
        %1172 = vmatmul.f32.gmra.mxu0 %v294
        %v1173 = vpop.f32.mrf.mxu0
        %v1174 = vadd.f32 %v1145, %v1173
        %1175 = vmatmul.f32.gmra.mxu0 %v300
        %v1176 = vpop.f32.mrf.mxu0
        %v1177 = vadd.f32 %v1148, %v1176
        %1178 = vdwg.mxu0
        %1179 = vmatpush.msra.mxu0 %v684
        %1180 = vmatpush.msra.mxu0 %v680
        %1181 = vmatpush.msra.mxu0 %v676
        %1182 = vmatpush.msra.mxu0 %v672
        %1183 = vmatpush.msra.mxu0 %v668
        %1184 = vmatpush.msra.mxu0 %v664
        %1185 = vmatpush.msra.mxu0 %v660
        %1186 = vmatpush.msra.mxu0 %v656
        %1187 = vmatpush.msra.mxu0 %v652
        %1188 = vmatpush.msra.mxu0 %v648
        %1189 = vmatpush.msra.mxu0 %v644
        %1190 = vmatpush.msra.mxu0 %v640
        %1191 = vmatpush.msra.mxu0 %v636
        %1192 = vmatpush.msra.mxu0 %v632
        %1193 = vmatpush.msra.mxu0 %v628
        %1194 = vmatpush.msra.mxu0 %v624
        %1195 = vmatmul.f32.gmra.mxu0 %v283
        %v1196 = vpop.f32.mrf.mxu0
        %v1197 = vadd.f32 %v1168, %v1196
        %1198 = vmatmul.f32.gmra.mxu0 %v289
        %v1199 = vpop.f32.mrf.mxu0
        %v1200 = vadd.f32 %v1171, %v1199
        %1201 = vmatmul.f32.gmra.mxu0 %v295
        %v1202 = vpop.f32.mrf.mxu0
        %v1203 = vadd.f32 %v1174, %v1202
        %1204 = vmatmul.f32.gmra.mxu0 %v301
        %v1205 = vpop.f32.mrf.mxu0
        %v1206 = vadd.f32 %v1177, %v1205
        %1207 = vdwg.mxu0
        %1208 = vmatpush.msra.mxu0 %v365
        %1209 = vmatpush.msra.mxu0 %v361
        %1210 = vmatpush.msra.mxu0 %v357
        %1211 = vmatpush.msra.mxu0 %v353
        %1212 = vmatpush.msra.mxu0 %v349
        %1213 = vmatpush.msra.mxu0 %v345
        %1214 = vmatpush.msra.mxu0 %v341
        %1215 = vmatpush.msra.mxu0 %v337
        %1216 = vmatpush.msra.mxu0 %v333
        %1217 = vmatpush.msra.mxu0 %v329
        %1218 = vmatpush.msra.mxu0 %v325
        %1219 = vmatpush.msra.mxu0 %v321
        %1220 = vmatpush.msra.mxu0 %v317
        %1221 = vmatpush.msra.mxu0 %v313
        %1222 = vmatpush.msra.mxu0 %v309
        %1223 = vmatpush.msra.mxu0 %v305
        %1224 = vmatmul.f32.gmra.mxu0 %v278
        %v1225 = vpop.f32.mrf.mxu0
        %v1226 = vadd.f32 0.0, %v1225
        %1227 = vmatmul.f32.gmra.mxu0 %v284
        %v1228 = vpop.f32.mrf.mxu0
        %v1229 = vadd.f32 0.0, %v1228
        %1230 = vmatmul.f32.gmra.mxu0 %v290
        %v1231 = vpop.f32.mrf.mxu0
        %v1232 = vadd.f32 0.0, %v1231
        %1233 = vmatmul.f32.gmra.mxu0 %v296
        %v1234 = vpop.f32.mrf.mxu0
        %v1235 = vadd.f32 0.0, %v1234
        %1236 = vdwg.mxu0
        %1237 = vmatpush.msra.mxu0 %v429
        %1238 = vmatpush.msra.mxu0 %v425
        %1239 = vmatpush.msra.mxu0 %v421
        %1240 = vmatpush.msra.mxu0 %v417
        %1241 = vmatpush.msra.mxu0 %v413
        %1242 = vmatpush.msra.mxu0 %v409
        %1243 = vmatpush.msra.mxu0 %v405
        %1244 = vmatpush.msra.mxu0 %v401
        %1245 = vmatpush.msra.mxu0 %v397
        %1246 = vmatpush.msra.mxu0 %v393
        %1247 = vmatpush.msra.mxu0 %v389
        %1248 = vmatpush.msra.mxu0 %v385
        %1249 = vmatpush.msra.mxu0 %v381
        %1250 = vmatpush.msra.mxu0 %v377
        %1251 = vmatpush.msra.mxu0 %v373
        %1252 = vmatpush.msra.mxu0 %v369
        %1253 = vmatmul.f32.gmra.mxu0 %v279
        %v1254 = vpop.f32.mrf.mxu0
        %v1255 = vadd.f32 %v1226, %v1254
        %1256 = vmatmul.f32.gmra.mxu0 %v285
        %v1257 = vpop.f32.mrf.mxu0
        %v1258 = vadd.f32 %v1229, %v1257
        %1259 = vmatmul.f32.gmra.mxu0 %v291
        %v1260 = vpop.f32.mrf.mxu0
        %v1261 = vadd.f32 %v1232, %v1260
        %1262 = vmatmul.f32.gmra.mxu0 %v297
        %v1263 = vpop.f32.mrf.mxu0
        %v1264 = vadd.f32 %v1235, %v1263
        %1265 = vdwg.mxu0
        %1266 = vmatpush.msra.mxu0 %v493
        %1267 = vmatpush.msra.mxu0 %v489
        %1268 = vmatpush.msra.mxu0 %v485
        %1269 = vmatpush.msra.mxu0 %v481
        %1270 = vmatpush.msra.mxu0 %v477
        %1271 = vmatpush.msra.mxu0 %v473
        %1272 = vmatpush.msra.mxu0 %v469
        %1273 = vmatpush.msra.mxu0 %v465
        %1274 = vmatpush.msra.mxu0 %v461
        %1275 = vmatpush.msra.mxu0 %v457
        %1276 = vmatpush.msra.mxu0 %v453
        %1277 = vmatpush.msra.mxu0 %v449
        %1278 = vmatpush.msra.mxu0 %v445
        %1279 = vmatpush.msra.mxu0 %v441
        %1280 = vmatpush.msra.mxu0 %v437
        %1281 = vmatpush.msra.mxu0 %v433
        %1282 = vmatmul.f32.gmra.mxu0 %v280
        %v1283 = vpop.f32.mrf.mxu0
        %v1284 = vadd.f32 %v1255, %v1283
        %1285 = vmatmul.f32.gmra.mxu0 %v286
        %v1286 = vpop.f32.mrf.mxu0
        %v1287 = vadd.f32 %v1258, %v1286
        %1288 = vmatmul.f32.gmra.mxu0 %v292
        %v1289 = vpop.f32.mrf.mxu0
        %v1290 = vadd.f32 %v1261, %v1289
        %1291 = vmatmul.f32.gmra.mxu0 %v298
        %v1292 = vpop.f32.mrf.mxu0
        %v1293 = vadd.f32 %v1264, %v1292
        %1294 = vdwg.mxu0
        %1295 = vmatpush.msra.mxu0 %v557
        %1296 = vmatpush.msra.mxu0 %v553
        %1297 = vmatpush.msra.mxu0 %v549
        %1298 = vmatpush.msra.mxu0 %v545
        %1299 = vmatpush.msra.mxu0 %v541
        %1300 = vmatpush.msra.mxu0 %v537
        %1301 = vmatpush.msra.mxu0 %v533
        %1302 = vmatpush.msra.mxu0 %v529
        %1303 = vmatpush.msra.mxu0 %v525
        %1304 = vmatpush.msra.mxu0 %v521
        %1305 = vmatpush.msra.mxu0 %v517
        %1306 = vmatpush.msra.mxu0 %v513
        %1307 = vmatpush.msra.mxu0 %v509
        %1308 = vmatpush.msra.mxu0 %v505
        %1309 = vmatpush.msra.mxu0 %v501
        %1310 = vmatpush.msra.mxu0 %v497
        %1311 = vmatmul.f32.gmra.mxu0 %v281
        %v1312 = vpop.f32.mrf.mxu0
        %v1313 = vadd.f32 %v1284, %v1312
        %1314 = vmatmul.f32.gmra.mxu0 %v287
        %v1315 = vpop.f32.mrf.mxu0
        %v1316 = vadd.f32 %v1287, %v1315
        %1317 = vmatmul.f32.gmra.mxu0 %v293
        %v1318 = vpop.f32.mrf.mxu0
        %v1319 = vadd.f32 %v1290, %v1318
        %1320 = vmatmul.f32.gmra.mxu0 %v299
        %v1321 = vpop.f32.mrf.mxu0
        %v1322 = vadd.f32 %v1293, %v1321
        %1323 = vdwg.mxu0
        %1324 = vmatpush.msra.mxu0 %v621
        %1325 = vmatpush.msra.mxu0 %v617
        %1326 = vmatpush.msra.mxu0 %v613
        %1327 = vmatpush.msra.mxu0 %v609
        %1328 = vmatpush.msra.mxu0 %v605
        %1329 = vmatpush.msra.mxu0 %v601
        %1330 = vmatpush.msra.mxu0 %v597
        %1331 = vmatpush.msra.mxu0 %v593
        %1332 = vmatpush.msra.mxu0 %v589
        %1333 = vmatpush.msra.mxu0 %v585
        %1334 = vmatpush.msra.mxu0 %v581
        %1335 = vmatpush.msra.mxu0 %v577
        %1336 = vmatpush.msra.mxu0 %v573
        %1337 = vmatpush.msra.mxu0 %v569
        %1338 = vmatpush.msra.mxu0 %v565
        %1339 = vmatpush.msra.mxu0 %v561
        %1340 = vmatmul.f32.gmra.mxu0 %v282
        %v1341 = vpop.f32.mrf.mxu0
        %v1342 = vadd.f32 %v1313, %v1341
        %1343 = vmatmul.f32.gmra.mxu0 %v288
        %v1344 = vpop.f32.mrf.mxu0
        %v1345 = vadd.f32 %v1316, %v1344
        %1346 = vmatmul.f32.gmra.mxu0 %v294
        %v1347 = vpop.f32.mrf.mxu0
        %v1348 = vadd.f32 %v1319, %v1347
        %1349 = vmatmul.f32.gmra.mxu0 %v300
        %v1350 = vpop.f32.mrf.mxu0
        %v1351 = vadd.f32 %v1322, %v1350
        %1352 = vdwg.mxu0
        %1353 = vmatpush.msra.mxu0 %v685
        %1354 = vmatpush.msra.mxu0 %v681
        %1355 = vmatpush.msra.mxu0 %v677
        %1356 = vmatpush.msra.mxu0 %v673
        %1357 = vmatpush.msra.mxu0 %v669
        %1358 = vmatpush.msra.mxu0 %v665
        %1359 = vmatpush.msra.mxu0 %v661
        %1360 = vmatpush.msra.mxu0 %v657
        %1361 = vmatpush.msra.mxu0 %v653
        %1362 = vmatpush.msra.mxu0 %v649
        %1363 = vmatpush.msra.mxu0 %v645
        %1364 = vmatpush.msra.mxu0 %v641
        %1365 = vmatpush.msra.mxu0 %v637
        %1366 = vmatpush.msra.mxu0 %v633
        %1367 = vmatpush.msra.mxu0 %v629
        %1368 = vmatpush.msra.mxu0 %v625
        %1369 = vmatmul.f32.gmra.mxu0 %v283
        %v1370 = vpop.f32.mrf.mxu0
        %v1371 = vadd.f32 %v1342, %v1370
        %1372 = vmatmul.f32.gmra.mxu0 %v289
        %v1373 = vpop.f32.mrf.mxu0
        %v1374 = vadd.f32 %v1345, %v1373
        %1375 = vmatmul.f32.gmra.mxu0 %v295
        %v1376 = vpop.f32.mrf.mxu0
        %v1377 = vadd.f32 %v1348, %v1376
        %1378 = vmatmul.f32.gmra.mxu0 %v301
        %v1379 = vpop.f32.mrf.mxu0
        %v1380 = vadd.f32 %v1351, %v1379
        %1381 = vdwg.mxu0
        %s1382 = smul.u32 %s23, 16
        %s1383 = smul.addr %s1382, 8
        %s1384 = scalar_lea.vmem [#allocation2], %s1383
        %1385 = vst [vmem:[%s1384] sm:$0xff] %v849
        %1386 = vst [vmem:[%s1384 + $0x8] sm:$0xff] %v1023
        %1387 = vst [vmem:[%s1384 + $0x10] sm:$0xff] %v1197
        %1388 = vst [vmem:[%s1384 + $0x18] sm:$0xff] %v1371
        %1389 = vst [vmem:[%s1384 + $0x20] sm:$0xff] %v852
        %1390 = vst [vmem:[%s1384 + $0x28] sm:$0xff] %v1026
        %1391 = vst [vmem:[%s1384 + $0x30] sm:$0xff] %v1200
        %1392 = vst [vmem:[%s1384 + $0x38] sm:$0xff] %v1374
        %1393 = vst [vmem:[%s1384 + $0x40] sm:$0xff] %v855
        %1394 = vst [vmem:[%s1384 + $0x48] sm:$0xff] %v1029
        %1395 = vst [vmem:[%s1384 + $0x50] sm:$0xff] %v1203
        %1396 = vst [vmem:[%s1384 + $0x58] sm:$0xff] %v1377
        %1397 = vst [vmem:[%s1384 + $0x60] sm:$0x1] %v858
        %1398 = vst [vmem:[%s1384 + $0x68] sm:$0x1] %v1032
        %1399 = vst [vmem:[%s1384 + $0x70] sm:$0x1] %v1206
        %1400 = vst [vmem:[%s1384 + $0x78] sm:$0x1] %v1380
        %p1401 = scmp.eq.s32.totalorder %s23, 3
        // Predicated region
        $region53: #{tpu_custom_call.1} parent=35 // pred_check
          %p1402 = pneg %p1401
        $region54: #{tpu_custom_call.1} parent=35 // pred_check_branch
          %1404 = sbr.rel (%p1402) target = $region56
        $region55: #{tpu_custom_call.1} parent=35 // pred_region
          %v1405 = vld [vmem:[#allocation2] sm:$0xff]
          %v1406 = vld [vmem:[#allocation2 + $0x8] sm:$0xff]
          %v1407 = vld [vmem:[#allocation2 + $0x10] sm:$0xff]
          %v1408 = vld [vmem:[#allocation2 + $0x18] sm:$0xff]
          %v1409 = vld [vmem:[#allocation2 + $0x20] sm:$0xff]
          %v1410 = vld [vmem:[#allocation2 + $0x28] sm:$0xff]
          %v1411 = vld [vmem:[#allocation2 + $0x30] sm:$0xff]
          %v1412 = vld [vmem:[#allocation2 + $0x38] sm:$0xff]
          %v1413 = vld [vmem:[#allocation2 + $0x40] sm:$0xff]
          %v1414 = vld [vmem:[#allocation2 + $0x48] sm:$0xff]
          %v1415 = vld [vmem:[#allocation2 + $0x50] sm:$0xff]
          %v1416 = vld [vmem:[#allocation2 + $0x58] sm:$0xff]
          %v1417 = vld [vmem:[#allocation2 + $0x60] sm:$0x1]
          %v1418 = vld [vmem:[#allocation2 + $0x68] sm:$0x1]
          %v1419 = vld [vmem:[#allocation2 + $0x70] sm:$0x1]
          %v1420 = vld [vmem:[#allocation2 + $0x78] sm:$0x1]
          %v1421 = vmax.f32 %v1405, %v1406
          %v1422 = vmax.f32 %v1421, %v1407
          %v1423 = vmax.f32 %v1422, %v1408
          %1424 = vmax.xlane.f32.xlu0 %v1423
          %v1425 = vpop.xlane.xlu0 %1424
          %v1426 = vmax.f32 %v1409, %v1410
          %v1427 = vmax.f32 %v1426, %v1411
          %v1428 = vmax.f32 %v1427, %v1412
          %1429 = vmax.xlane.f32.xlu0 %v1428
          %v1430 = vpop.xlane.xlu0 %1429
          %v1431 = vmax.f32 %v1413, %v1414
          %v1432 = vmax.f32 %v1431, %v1415
          %v1433 = vmax.f32 %v1432, %v1416
          %1434 = vmax.xlane.f32.xlu0 %v1433
          %v1435 = vpop.xlane.xlu0 %1434
          %vm1436 = vcmask 1040384
          %v1437 = vsel %vm1436, %v1417, -inf
          %v1438 = vsel %vm1436, %v1418, -inf
          %v1439 = vmax.f32 %v1437, %v1438
          %v1440 = vsel %vm1436, %v1419, -inf
          %v1441 = vmax.f32 %v1439, %v1440
          %v1442 = vsel %vm1436, %v1420, -inf
          %v1443 = vmax.f32 %v1441, %v1442
          %1444 = vmax.xlane.f32.xlu0 %v1443
          %v1445 = vpop.xlane.xlu0 %1444
          %s1446 = scalar_lea.vmem [#allocation2], 128
          %v1447 = vld [vmem:[%s1446] sm:$0xff]
          %v1448 = vld [vmem:[%s1446 + $0x8] sm:$0xff]
          %v1449 = vld [vmem:[%s1446 + $0x10] sm:$0xff]
          %v1450 = vld [vmem:[%s1446 + $0x18] sm:$0xff]
          %v1451 = vld [vmem:[%s1446 + $0x20] sm:$0xff]
          %v1452 = vld [vmem:[%s1446 + $0x28] sm:$0xff]
          %v1453 = vld [vmem:[%s1446 + $0x30] sm:$0xff]
          %v1454 = vld [vmem:[%s1446 + $0x38] sm:$0xff]
          %v1455 = vld [vmem:[%s1446 + $0x40] sm:$0xff]
          %v1456 = vld [vmem:[%s1446 + $0x48] sm:$0xff]
          %v1457 = vld [vmem:[%s1446 + $0x50] sm:$0xff]
          %v1458 = vld [vmem:[%s1446 + $0x58] sm:$0xff]
          %v1459 = vld [vmem:[%s1446 + $0x60] sm:$0x1]
          %v1460 = vld [vmem:[%s1446 + $0x68] sm:$0x1]
          %v1461 = vld [vmem:[%s1446 + $0x70] sm:$0x1]
          %v1462 = vld [vmem:[%s1446 + $0x78] sm:$0x1]
          %v1463 = vmax.f32 %v1447, %v1448
          %v1464 = vmax.f32 %v1463, %v1449
          %v1465 = vmax.f32 %v1464, %v1450
          %1466 = vmax.xlane.f32.xlu0 %v1465
          %v1467 = vpop.xlane.xlu0 %1466
          %v1468 = vmax.f32 %v1451, %v1452
          %v1469 = vmax.f32 %v1468, %v1453
          %v1470 = vmax.f32 %v1469, %v1454
          %1471 = vmax.xlane.f32.xlu0 %v1470
          %v1472 = vpop.xlane.xlu0 %1471
          %v1473 = vmax.f32 %v1455, %v1456
          %v1474 = vmax.f32 %v1473, %v1457
          %v1475 = vmax.f32 %v1474, %v1458
          %1476 = vmax.xlane.f32.xlu0 %v1475
          %v1477 = vpop.xlane.xlu0 %1476
          %v1478 = vsel %vm1436, %v1459, -inf
          %v1479 = vsel %vm1436, %v1460, -inf
          %v1480 = vmax.f32 %v1478, %v1479
          %v1481 = vsel %vm1436, %v1461, -inf
          %v1482 = vmax.f32 %v1480, %v1481
          %v1483 = vsel %vm1436, %v1462, -inf
          %v1484 = vmax.f32 %v1482, %v1483
          %1485 = vmax.xlane.f32.xlu0 %v1484
          %v1486 = vpop.xlane.xlu0 %1485
          %v1487 = vmax.f32 %v1425, %v1467
          %v1488 = vmax.f32 %v1430, %v1472
          %v1489 = vmax.f32 %v1435, %v1477
          %v1490 = vmax.f32 %v1445, %v1486
          %s1491 = scalar_lea.vmem [#allocation2], 256
          %v1492 = vld [vmem:[%s1491] sm:$0xff]
          %v1493 = vld [vmem:[%s1491 + $0x8] sm:$0xff]
          %v1494 = vld [vmem:[%s1491 + $0x10] sm:$0xff]
          %v1495 = vld [vmem:[%s1491 + $0x18] sm:$0xff]
          %v1496 = vld [vmem:[%s1491 + $0x20] sm:$0xff]
          %v1497 = vld [vmem:[%s1491 + $0x28] sm:$0xff]
          %v1498 = vld [vmem:[%s1491 + $0x30] sm:$0xff]
          %v1499 = vld [vmem:[%s1491 + $0x38] sm:$0xff]
          %v1500 = vld [vmem:[%s1491 + $0x40] sm:$0xff]
          %v1501 = vld [vmem:[%s1491 + $0x48] sm:$0xff]
          %v1502 = vld [vmem:[%s1491 + $0x50] sm:$0xff]
          %v1503 = vld [vmem:[%s1491 + $0x58] sm:$0xff]
          %v1504 = vld [vmem:[%s1491 + $0x60] sm:$0x1]
          %v1505 = vld [vmem:[%s1491 + $0x68] sm:$0x1]
          %v1506 = vld [vmem:[%s1491 + $0x70] sm:$0x1]
          %v1507 = vld [vmem:[%s1491 + $0x78] sm:$0x1]
          %v1508 = vmax.f32 %v1492, %v1493
          %v1509 = vmax.f32 %v1508, %v1494
          %v1510 = vmax.f32 %v1509, %v1495
          %1511 = vmax.xlane.f32.xlu0 %v1510
          %v1512 = vpop.xlane.xlu0 %1511
          %v1513 = vmax.f32 %v1496, %v1497
          %v1514 = vmax.f32 %v1513, %v1498
          %v1515 = vmax.f32 %v1514, %v1499
          %1516 = vmax.xlane.f32.xlu0 %v1515
          %v1517 = vpop.xlane.xlu0 %1516
          %v1518 = vmax.f32 %v1500, %v1501
          %v1519 = vmax.f32 %v1518, %v1502
          %v1520 = vmax.f32 %v1519, %v1503
          %1521 = vmax.xlane.f32.xlu0 %v1520
          %v1522 = vpop.xlane.xlu0 %1521
          %v1523 = vsel %vm1436, %v1504, -inf
          %v1524 = vsel %vm1436, %v1505, -inf
          %v1525 = vmax.f32 %v1523, %v1524
          %v1526 = vsel %vm1436, %v1506, -inf
          %v1527 = vmax.f32 %v1525, %v1526
          %v1528 = vsel %vm1436, %v1507, -inf
          %v1529 = vmax.f32 %v1527, %v1528
          %1530 = vmax.xlane.f32.xlu0 %v1529
          %v1531 = vpop.xlane.xlu0 %1530
          %v1532 = vmax.f32 %v1487, %v1512
          %v1533 = vmax.f32 %v1488, %v1517
          %v1534 = vmax.f32 %v1489, %v1522
          %v1535 = vmax.f32 %v1490, %v1531
          %s1536 = scalar_lea.vmem [#allocation2], 384
          %v1537 = vld [vmem:[%s1536] sm:$0xff]
          %v1538 = vld [vmem:[%s1536 + $0x8] sm:$0xff]
          %v1539 = vld [vmem:[%s1536 + $0x10] sm:$0xff]
          %v1540 = vld [vmem:[%s1536 + $0x18] sm:$0xff]
          %v1541 = vld [vmem:[%s1536 + $0x20] sm:$0xff]
          %v1542 = vld [vmem:[%s1536 + $0x28] sm:$0xff]
          %v1543 = vld [vmem:[%s1536 + $0x30] sm:$0xff]
          %v1544 = vld [vmem:[%s1536 + $0x38] sm:$0xff]
          %v1545 = vld [vmem:[%s1536 + $0x40] sm:$0xff]
          %v1546 = vld [vmem:[%s1536 + $0x48] sm:$0xff]
          %v1547 = vld [vmem:[%s1536 + $0x50] sm:$0xff]
          %v1548 = vld [vmem:[%s1536 + $0x58] sm:$0xff]
          %v1549 = vld [vmem:[%s1536 + $0x60] sm:$0x1]
          %v1550 = vld [vmem:[%s1536 + $0x68] sm:$0x1]
          %v1551 = vld [vmem:[%s1536 + $0x70] sm:$0x1]
          %v1552 = vld [vmem:[%s1536 + $0x78] sm:$0x1]
          %v1553 = vmax.f32 %v1537, %v1538
          %v1554 = vmax.f32 %v1553, %v1539
          %v1555 = vmax.f32 %v1554, %v1540
          %1556 = vmax.xlane.f32.xlu0 %v1555
          %v1557 = vpop.xlane.xlu0 %1556
          %v1558 = vmax.f32 %v1541, %v1542
          %v1559 = vmax.f32 %v1558, %v1543
          %v1560 = vmax.f32 %v1559, %v1544
          %1561 = vmax.xlane.f32.xlu0 %v1560
          %v1562 = vpop.xlane.xlu0 %1561
          %v1563 = vmax.f32 %v1545, %v1546
          %v1564 = vmax.f32 %v1563, %v1547
          %v1565 = vmax.f32 %v1564, %v1548
          %1566 = vmax.xlane.f32.xlu0 %v1565
          %v1567 = vpop.xlane.xlu0 %1566
          %v1568 = vsel %vm1436, %v1549, -inf
          %v1569 = vsel %vm1436, %v1550, -inf
          %v1570 = vmax.f32 %v1568, %v1569
          %v1571 = vsel %vm1436, %v1551, -inf
          %v1572 = vmax.f32 %v1570, %v1571
          %v1573 = vsel %vm1436, %v1552, -inf
          %v1574 = vmax.f32 %v1572, %v1573
          %1575 = vmax.xlane.f32.xlu0 %v1574
          %v1576 = vpop.xlane.xlu0 %1575
          %v1577 = vmax.f32 %v1532, %v1557
          %v1578 = vmax.f32 %v1533, %v1562
          %v1579 = vmax.f32 %v1534, %v1567
          %v1580 = vmax.f32 %v1535, %v1576
          %v1581 = vsub.f32 %v1405, %v1577
          %v1582 = vsub.f32 %v1406, %v1577
          %v1583 = vsub.f32 %v1407, %v1577
          %v1584 = vsub.f32 %v1408, %v1577
          %v1585 = vsub.f32 %v1409, %v1578
          %v1586 = vsub.f32 %v1410, %v1578
          %v1587 = vsub.f32 %v1411, %v1578
          %v1588 = vsub.f32 %v1412, %v1578
          %v1589 = vsub.f32 %v1413, %v1579
          %v1590 = vsub.f32 %v1414, %v1579
          %v1591 = vsub.f32 %v1415, %v1579
          %v1592 = vsub.f32 %v1416, %v1579
          %v1593 = vsub.f32 %v1417, %v1580
          %v1594 = vsub.f32 %v1418, %v1580
          %v1595 = vsub.f32 %v1419, %v1580
          %v1596 = vsub.f32 %v1420, %v1580
          %v1597 = vmul.f32 %v1581, 1.442695
          %v1598 = vpow.pop %v1597
          %v1599 = vmul.f32 %v1582, 1.442695
          %v1600 = vpow.pop %v1599
          %v1601 = vmul.f32 %v1583, 1.442695
          %v1602 = vpow.pop %v1601
          %v1603 = vmul.f32 %v1584, 1.442695
          %v1604 = vpow.pop %v1603
          %v1605 = vmul.f32 %v1585, 1.442695
          %v1606 = vpow.pop %v1605
          %v1607 = vmul.f32 %v1586, 1.442695
          %v1608 = vpow.pop %v1607
          %v1609 = vmul.f32 %v1587, 1.442695
          %v1610 = vpow.pop %v1609
          %v1611 = vmul.f32 %v1588, 1.442695
          %v1612 = vpow.pop %v1611
          %v1613 = vmul.f32 %v1589, 1.442695
          %v1614 = vpow.pop %v1613
          %v1615 = vmul.f32 %v1590, 1.442695
          %v1616 = vpow.pop %v1615
          %v1617 = vmul.f32 %v1591, 1.442695
          %v1618 = vpow.pop %v1617
          %v1619 = vmul.f32 %v1592, 1.442695
          %v1620 = vpow.pop %v1619
          %v1621 = vmul.f32 %v1593, 1.442695
          %v1622 = vpow.pop %v1621
          %v1623 = vmul.f32 %v1594, 1.442695
          %v1624 = vpow.pop %v1623
          %v1625 = vmul.f32 %v1595, 1.442695
          %v1626 = vpow.pop %v1625
          %v1627 = vmul.f32 %v1596, 1.442695
          %v1628 = vpow.pop %v1627
          %v1629 = vsub.f32 %v1447, %v1577
          %v1630 = vsub.f32 %v1448, %v1577
          %v1631 = vsub.f32 %v1449, %v1577
          %v1632 = vsub.f32 %v1450, %v1577
          %v1633 = vsub.f32 %v1451, %v1578
          %v1634 = vsub.f32 %v1452, %v1578
          %v1635 = vsub.f32 %v1453, %v1578
          %v1636 = vsub.f32 %v1454, %v1578
          %v1637 = vsub.f32 %v1455, %v1579
          %v1638 = vsub.f32 %v1456, %v1579
          %v1639 = vsub.f32 %v1457, %v1579
          %v1640 = vsub.f32 %v1458, %v1579
          %v1641 = vsub.f32 %v1459, %v1580
          %v1642 = vsub.f32 %v1460, %v1580
          %v1643 = vsub.f32 %v1461, %v1580
          %v1644 = vsub.f32 %v1462, %v1580
          %v1645 = vmul.f32 %v1629, 1.442695
          %v1646 = vpow.pop %v1645
          %v1647 = vmul.f32 %v1630, 1.442695
          %v1648 = vpow.pop %v1647
          %v1649 = vmul.f32 %v1631, 1.442695
          %v1650 = vpow.pop %v1649
          %v1651 = vmul.f32 %v1632, 1.442695
          %v1652 = vpow.pop %v1651
          %v1653 = vmul.f32 %v1633, 1.442695
          %v1654 = vpow.pop %v1653
          %v1655 = vmul.f32 %v1634, 1.442695
          %v1656 = vpow.pop %v1655
          %v1657 = vmul.f32 %v1635, 1.442695
          %v1658 = vpow.pop %v1657
          %v1659 = vmul.f32 %v1636, 1.442695
          %v1660 = vpow.pop %v1659
          %v1661 = vmul.f32 %v1637, 1.442695
          %v1662 = vpow.pop %v1661
          %v1663 = vmul.f32 %v1638, 1.442695
          %v1664 = vpow.pop %v1663
          %v1665 = vmul.f32 %v1639, 1.442695
          %v1666 = vpow.pop %v1665
          %v1667 = vmul.f32 %v1640, 1.442695
          %v1668 = vpow.pop %v1667
          %v1669 = vmul.f32 %v1641, 1.442695
          %v1670 = vpow.pop %v1669
          %v1671 = vmul.f32 %v1642, 1.442695
          %v1672 = vpow.pop %v1671
          %v1673 = vmul.f32 %v1643, 1.442695
          %v1674 = vpow.pop %v1673
          %v1675 = vmul.f32 %v1644, 1.442695
          %v1676 = vpow.pop %v1675
          %v1677 = vsub.f32 %v1492, %v1577
          %v1678 = vsub.f32 %v1493, %v1577
          %v1679 = vsub.f32 %v1494, %v1577
          %v1680 = vsub.f32 %v1495, %v1577
          %v1681 = vsub.f32 %v1496, %v1578
          %v1682 = vsub.f32 %v1497, %v1578
          %v1683 = vsub.f32 %v1498, %v1578
          %v1684 = vsub.f32 %v1499, %v1578
          %v1685 = vsub.f32 %v1500, %v1579
          %v1686 = vsub.f32 %v1501, %v1579
          %v1687 = vsub.f32 %v1502, %v1579
          %v1688 = vsub.f32 %v1503, %v1579
          %v1689 = vsub.f32 %v1504, %v1580
          %v1690 = vsub.f32 %v1505, %v1580
          %v1691 = vsub.f32 %v1506, %v1580
          %v1692 = vsub.f32 %v1507, %v1580
          %v1693 = vmul.f32 %v1677, 1.442695
          %v1694 = vpow.pop %v1693
          %v1695 = vmul.f32 %v1678, 1.442695
          %v1696 = vpow.pop %v1695
          %v1697 = vmul.f32 %v1679, 1.442695
          %v1698 = vpow.pop %v1697
          %v1699 = vmul.f32 %v1680, 1.442695
          %v1700 = vpow.pop %v1699
          %v1701 = vmul.f32 %v1681, 1.442695
          %v1702 = vpow.pop %v1701
          %v1703 = vmul.f32 %v1682, 1.442695
          %v1704 = vpow.pop %v1703
          %v1705 = vmul.f32 %v1683, 1.442695
          %v1706 = vpow.pop %v1705
          %v1707 = vmul.f32 %v1684, 1.442695
          %v1708 = vpow.pop %v1707
          %v1709 = vmul.f32 %v1685, 1.442695
          %v1710 = vpow.pop %v1709
          %v1711 = vmul.f32 %v1686, 1.442695
          %v1712 = vpow.pop %v1711
          %v1713 = vmul.f32 %v1687, 1.442695
          %v1714 = vpow.pop %v1713
          %v1715 = vmul.f32 %v1688, 1.442695
          %v1716 = vpow.pop %v1715
          %v1717 = vmul.f32 %v1689, 1.442695
          %v1718 = vpow.pop %v1717
          %v1719 = vmul.f32 %v1690, 1.442695
          %v1720 = vpow.pop %v1719
          %v1721 = vmul.f32 %v1691, 1.442695
          %v1722 = vpow.pop %v1721
          %v1723 = vmul.f32 %v1692, 1.442695
          %v1724 = vpow.pop %v1723
          %v1725 = vsub.f32 %v1537, %v1577
          %v1726 = vsub.f32 %v1538, %v1577
          %v1727 = vsub.f32 %v1539, %v1577
          %v1728 = vsub.f32 %v1540, %v1577
          %v1729 = vsub.f32 %v1541, %v1578
          %v1730 = vsub.f32 %v1542, %v1578
          %v1731 = vsub.f32 %v1543, %v1578
          %v1732 = vsub.f32 %v1544, %v1578
          %v1733 = vsub.f32 %v1545, %v1579
          %v1734 = vsub.f32 %v1546, %v1579
          %v1735 = vsub.f32 %v1547, %v1579
          %v1736 = vsub.f32 %v1548, %v1579
          %v1737 = vsub.f32 %v1549, %v1580
          %v1738 = vsub.f32 %v1550, %v1580
          %v1739 = vsub.f32 %v1551, %v1580
          %v1740 = vsub.f32 %v1552, %v1580
          %v1741 = vmul.f32 %v1725, 1.442695
          %v1742 = vpow.pop %v1741
          %v1743 = vmul.f32 %v1726, 1.442695
          %v1744 = vpow.pop %v1743
          %v1745 = vmul.f32 %v1727, 1.442695
          %v1746 = vpow.pop %v1745
          %v1747 = vmul.f32 %v1728, 1.442695
          %v1748 = vpow.pop %v1747
          %v1749 = vmul.f32 %v1729, 1.442695
          %v1750 = vpow.pop %v1749
          %v1751 = vmul.f32 %v1730, 1.442695
          %v1752 = vpow.pop %v1751
          %v1753 = vmul.f32 %v1731, 1.442695
          %v1754 = vpow.pop %v1753
          %v1755 = vmul.f32 %v1732, 1.442695
          %v1756 = vpow.pop %v1755
          %v1757 = vmul.f32 %v1733, 1.442695
          %v1758 = vpow.pop %v1757
          %v1759 = vmul.f32 %v1734, 1.442695
          %v1760 = vpow.pop %v1759
          %v1761 = vmul.f32 %v1735, 1.442695
          %v1762 = vpow.pop %v1761
          %v1763 = vmul.f32 %v1736, 1.442695
          %v1764 = vpow.pop %v1763
          %v1765 = vmul.f32 %v1737, 1.442695
          %v1766 = vpow.pop %v1765
          %v1767 = vmul.f32 %v1738, 1.442695
          %v1768 = vpow.pop %v1767
          %v1769 = vmul.f32 %v1739, 1.442695
          %v1770 = vpow.pop %v1769
          %v1771 = vmul.f32 %v1740, 1.442695
          %v1772 = vpow.pop %v1771
          %v1773 = vlaneseq
          %v1774 = vand.u32 %v1773, 127
          %v1775 = vadd.s32 %v1774, 128
          %v1776 = vadd.s32 %v1774, 256
          %v1777 = vadd.s32 %v1774, 384
          %vm1778 = vcmp.lt.s32.totalorder %v1774, 75
          %vm1779 = vcmp.lt.s32.totalorder %v1775, 75
          %vm1780 = vcmp.lt.s32.totalorder %v1776, 75
          %vm1781 = vcmp.lt.s32.totalorder %v1777, 75
          %v1782 = vsel %vm1778, %v1742, 0.0
          %v1783 = vsel %vm1779, %v1744, 0.0
          %v1784 = vsel %vm1780, %v1746, 0.0
          %v1785 = vsel %vm1781, %v1748, 0.0
          %v1786 = vsel %vm1778, %v1750, 0.0
          %v1787 = vsel %vm1779, %v1752, 0.0
          %v1788 = vsel %vm1780, %v1754, 0.0
          %v1789 = vsel %vm1781, %v1756, 0.0
          %v1790 = vsel %vm1778, %v1758, 0.0
          %v1791 = vsel %vm1779, %v1760, 0.0
          %v1792 = vsel %vm1780, %v1762, 0.0
          %v1793 = vsel %vm1781, %v1764, 0.0
          %v1794 = vsel %vm1778, %v1766, 0.0
          %v1795 = vsel %vm1779, %v1768, 0.0
          %v1796 = vsel %vm1780, %v1770, 0.0
          %v1797 = vsel %vm1781, %v1772, 0.0
          %v1798 = vadd.f32 %v1598, %v1600
          %v1799 = vadd.f32 %v1798, %v1602
          %v1800 = vadd.f32 %v1799, %v1604
          %1801 = vadd.xlane.f32.xlu0 %v1800
          %v1802 = vpop.xlane.xlu0 %1801
          %v1803 = vadd.f32 %v1606, %v1608
          %v1804 = vadd.f32 %v1803, %v1610
          %v1805 = vadd.f32 %v1804, %v1612
          %1806 = vadd.xlane.f32.xlu0 %v1805
          %v1807 = vpop.xlane.xlu0 %1806
          %v1808 = vadd.f32 %v1614, %v1616
          %v1809 = vadd.f32 %v1808, %v1618
          %v1810 = vadd.f32 %v1809, %v1620
          %1811 = vadd.xlane.f32.xlu0 %v1810
          %v1812 = vpop.xlane.xlu0 %1811
          %v1813 = vsel %vm1436, %v1622, 0.0
          %v1814 = vsel %vm1436, %v1624, 0.0
          %v1815 = vadd.f32 %v1813, %v1814
          %v1816 = vsel %vm1436, %v1626, 0.0
          %v1817 = vadd.f32 %v1815, %v1816
          %v1818 = vsel %vm1436, %v1628, 0.0
          %v1819 = vadd.f32 %v1817, %v1818
          %1820 = vadd.xlane.f32.xlu0 %v1819
          %v1821 = vpop.xlane.xlu0 %1820
          %v1822 = vadd.f32 %v1646, %v1648
          %v1823 = vadd.f32 %v1822, %v1650
          %v1824 = vadd.f32 %v1823, %v1652
          %1825 = vadd.xlane.f32.xlu0 %v1824
          %v1826 = vpop.xlane.xlu0 %1825
          %v1827 = vadd.f32 %v1654, %v1656
          %v1828 = vadd.f32 %v1827, %v1658
          %v1829 = vadd.f32 %v1828, %v1660
          %1830 = vadd.xlane.f32.xlu0 %v1829
          %v1831 = vpop.xlane.xlu0 %1830
          %v1832 = vadd.f32 %v1662, %v1664
          %v1833 = vadd.f32 %v1832, %v1666
          %v1834 = vadd.f32 %v1833, %v1668
          %1835 = vadd.xlane.f32.xlu0 %v1834
          %v1836 = vpop.xlane.xlu0 %1835
          %v1837 = vsel %vm1436, %v1670, 0.0
          %v1838 = vsel %vm1436, %v1672, 0.0
          %v1839 = vadd.f32 %v1837, %v1838
          %v1840 = vsel %vm1436, %v1674, 0.0
          %v1841 = vadd.f32 %v1839, %v1840
          %v1842 = vsel %vm1436, %v1676, 0.0
          %v1843 = vadd.f32 %v1841, %v1842
          %1844 = vadd.xlane.f32.xlu0 %v1843
          %v1845 = vpop.xlane.xlu0 %1844
          %v1846 = vadd.f32 %v1802, %v1826
          %v1847 = vadd.f32 %v1807, %v1831
          %v1848 = vadd.f32 %v1812, %v1836
          %v1849 = vadd.f32 %v1821, %v1845
          %v1850 = vadd.f32 %v1694, %v1696
          %v1851 = vadd.f32 %v1850, %v1698
          %v1852 = vadd.f32 %v1851, %v1700
          %1853 = vadd.xlane.f32.xlu0 %v1852
          %v1854 = vpop.xlane.xlu0 %1853
          %v1855 = vadd.f32 %v1702, %v1704
          %v1856 = vadd.f32 %v1855, %v1706
          %v1857 = vadd.f32 %v1856, %v1708
          %1858 = vadd.xlane.f32.xlu0 %v1857
          %v1859 = vpop.xlane.xlu0 %1858
          %v1860 = vadd.f32 %v1710, %v1712
          %v1861 = vadd.f32 %v1860, %v1714
          %v1862 = vadd.f32 %v1861, %v1716
          %1863 = vadd.xlane.f32.xlu0 %v1862
          %v1864 = vpop.xlane.xlu0 %1863
          %v1865 = vsel %vm1436, %v1718, 0.0
          %v1866 = vsel %vm1436, %v1720, 0.0
          %v1867 = vadd.f32 %v1865, %v1866
          %v1868 = vsel %vm1436, %v1722, 0.0
          %v1869 = vadd.f32 %v1867, %v1868
          %v1870 = vsel %vm1436, %v1724, 0.0
          %v1871 = vadd.f32 %v1869, %v1870
          %1872 = vadd.xlane.f32.xlu0 %v1871
          %v1873 = vpop.xlane.xlu0 %1872
          %v1874 = vadd.f32 %v1846, %v1854
          %v1875 = vadd.f32 %v1847, %v1859
          %v1876 = vadd.f32 %v1848, %v1864
          %v1877 = vadd.f32 %v1849, %v1873
          %v1878 = vadd.f32 %v1782, %v1783
          %v1879 = vadd.f32 %v1878, %v1784
          %v1880 = vadd.f32 %v1879, %v1785
          %1881 = vadd.xlane.f32.xlu0 %v1880
          %v1882 = vpop.xlane.xlu0 %1881
          %v1883 = vadd.f32 %v1786, %v1787
          %v1884 = vadd.f32 %v1883, %v1788
          %v1885 = vadd.f32 %v1884, %v1789
          %1886 = vadd.xlane.f32.xlu0 %v1885
          %v1887 = vpop.xlane.xlu0 %1886
          %v1888 = vadd.f32 %v1790, %v1791
          %v1889 = vadd.f32 %v1888, %v1792
          %v1890 = vadd.f32 %v1889, %v1793
          %1891 = vadd.xlane.f32.xlu0 %v1890
          %v1892 = vpop.xlane.xlu0 %1891
          %v1893 = vsel %vm1436, %v1794, 0.0
          %v1894 = vsel %vm1436, %v1795, 0.0
          %v1895 = vadd.f32 %v1893, %v1894
          %v1896 = vsel %vm1436, %v1796, 0.0
          %v1897 = vadd.f32 %v1895, %v1896
          %v1898 = vsel %vm1436, %v1797, 0.0
          %v1899 = vadd.f32 %v1897, %v1898
          %1900 = vadd.xlane.f32.xlu0 %v1899
          %v1901 = vpop.xlane.xlu0 %1900
          %v1902 = vadd.f32 %v1874, %v1882
          %v1903 = vadd.f32 %v1875, %v1887
          %v1904 = vadd.f32 %v1876, %v1892
          %v1905 = vadd.f32 %v1877, %v1901
          %v1906 = vrcp.pop %v1902
          %v1907 = vmul.f32 %v1902, %v1906
          %v1908 = vsub.f32 1.0, %v1907
          %v1909 = vmul.f32 %v1906, %v1908
          %v1910 = vadd.f32 %v1906, %v1909
          %vm1911 = vweird.f32 %v1902
          %vm1912 = vweird.f32 %v1906
          %vm1913 = vmor %vm1911, %vm1912
          %v1914 = vsel %vm1913, %v1906, %v1910
          %v1915 = vand.u32 2147483647, %v1902
          %vm1916 = vcmp.eq.f32.partialorder %v1915, 8.507059e+37
          %v1917 = vand.u32 %v1902, 2147483648
          %v1918 = vor.u32 1.1754944e-38, %v1917
          %v1919 = vsel %vm1916, %v1918, %v1914
          %v1920 = vrcp.pop %v1903
          %v1921 = vmul.f32 %v1903, %v1920
          %v1922 = vsub.f32 1.0, %v1921
          %v1923 = vmul.f32 %v1920, %v1922
          %v1924 = vadd.f32 %v1920, %v1923
          %vm1925 = vweird.f32 %v1903
          %vm1926 = vweird.f32 %v1920
          %vm1927 = vmor %vm1925, %vm1926
          %v1928 = vsel %vm1927, %v1920, %v1924
          %v1929 = vand.u32 2147483647, %v1903
          %vm1930 = vcmp.eq.f32.partialorder %v1929, 8.507059e+37
          %v1931 = vand.u32 %v1903, 2147483648
          %v1932 = vor.u32 1.1754944e-38, %v1931
          %v1933 = vsel %vm1930, %v1932, %v1928
          %v1934 = vrcp.pop %v1904
          %v1935 = vmul.f32 %v1904, %v1934
          %v1936 = vsub.f32 1.0, %v1935
          %v1937 = vmul.f32 %v1934, %v1936
          %v1938 = vadd.f32 %v1934, %v1937
          %vm1939 = vweird.f32 %v1904
          %vm1940 = vweird.f32 %v1934
          %vm1941 = vmor %vm1939, %vm1940
          %v1942 = vsel %vm1941, %v1934, %v1938
          %v1943 = vand.u32 2147483647, %v1904
          %vm1944 = vcmp.eq.f32.partialorder %v1943, 8.507059e+37
          %v1945 = vand.u32 %v1904, 2147483648
          %v1946 = vor.u32 1.1754944e-38, %v1945
          %v1947 = vsel %vm1944, %v1946, %v1942
          %v1948 = vrcp.pop %v1905
          %v1949 = vmul.f32 %v1905, %v1948
          %v1950 = vsub.f32 1.0, %v1949
          %v1951 = vmul.f32 %v1948, %v1950
          %v1952 = vadd.f32 %v1948, %v1951
          %vm1953 = vweird.f32 %v1905
          %vm1954 = vweird.f32 %v1948
          %vm1955 = vmor %vm1953, %vm1954
          %v1956 = vsel %vm1955, %v1948, %v1952
          %v1957 = vand.u32 2147483647, %v1905
          %vm1958 = vcmp.eq.f32.partialorder %v1957, 8.507059e+37
          %v1959 = vand.u32 %v1905, 2147483648
          %v1960 = vor.u32 1.1754944e-38, %v1959
          %v1961 = vsel %vm1958, %v1960, %v1956
          %v1962 = vld [vmem:[#allocation8] sm:$0xff]
          %v1967 = vperm.slane %v1919, %v1774
          %v1968 = vadd.s32 %v1774, 4294967288
          %v1969 = vperm.slane %v1933, %v1968
          %vm1970 = vcmask 130112
          %v1971 = vsel %vm1970, %v1969, %v1967
          %v1972 = vadd.s32 %v1774, 4294967280
          %v1973 = vperm.slane %v1947, %v1972
          %vm1974 = vcmask 195712
          %v1975 = vsel %vm1974, %v1973, %v1971
          %v1976 = vadd.s32 %v1774, 4294967272
          %v1977 = vperm.slane %v1961, %v1976
          %vm1978 = vcmask 261312
          %v1979 = vsel %vm1978, %v1977, %v1975
          %vm1980 = vcmask 1042434
          %v1981 = vsel %vm1980, %v1979, %v1979
          %vm1982 = vcmask 1043459
          %v1983 = vsel %vm1982, %v1979, %v1981
          %vm1984 = vcmask 1044484
          %v1985 = vsel %vm1984, %v1979, %v1983
          %vm1986 = vcmask 1045509
          %v1987 = vsel %vm1986, %v1979, %v1985
          %vm1988 = vcmask 1046534
          %v1989 = vsel %vm1988, %v1979, %v1987
          %vm1990 = vcmask 1047559
          %v1991 = vsel %vm1990, %v1979, %v1989
          %v1993 = vmul.f32 %v1962, %v1991
          %vm1994 = vcmask 203776
          %v1996 = vsel %vm1994, %v1993, 0
          %v1999 = vsel %vm1436, %v1622, 0
          %v2002 = vsel %vm1436, %v1624, 0
          %v2005 = vsel %vm1436, %v1626, 0
          %v2008 = vsel %vm1436, %v1628, 0
          %2010 = vmatpush.msra.mxu0 0.0
          %2011 = vmatpush.msra.mxu0 0.0
          %2012 = vmatpush.msra.mxu0 0.0
          %2013 = vmatpush.msra.mxu0 0.0
          %2014 = vmatpush.msra.mxu0 0.0
          %2015 = vmatpush.msra.mxu0 0.0
          %2016 = vmatpush.msra.mxu0 0.0
          %2017 = vmatpush.msra.mxu0 0.0
          %2018 = vmatpush.msra.mxu0 0.0
          %2019 = vmatpush.msra.mxu0 0.0
          %2020 = vmatpush.msra.mxu0 0.0
          %2021 = vmatpush.msra.mxu0 0.0
          %2022 = vmatpush.msra.mxu0 %v1999
          %2023 = vmatpush.msra.mxu0 %v1614
          %2024 = vmatpush.msra.mxu0 %v1606
          %2025 = vmatpush.msra.mxu0 %v1598
          %2026 = vmatmul.f32.gmra.mxu0 %v1996
          %v2027 = vpop.f32.mrf.mxu0
          %v2028 = vadd.f32 1e-06, %v2027
          %2029 = vdwg.mxu0
          %2030 = vmatpush.msra.mxu0 0.0
          %2031 = vmatpush.msra.mxu0 0.0
          %2032 = vmatpush.msra.mxu0 0.0
          %2033 = vmatpush.msra.mxu0 0.0
          %2034 = vmatpush.msra.mxu0 0.0
          %2035 = vmatpush.msra.mxu0 0.0
          %2036 = vmatpush.msra.mxu0 0.0
          %2037 = vmatpush.msra.mxu0 0.0
          %2038 = vmatpush.msra.mxu0 0.0
          %2039 = vmatpush.msra.mxu0 0.0
          %2040 = vmatpush.msra.mxu0 0.0
          %2041 = vmatpush.msra.mxu0 0.0
          %2042 = vmatpush.msra.mxu0 %v2002
          %2043 = vmatpush.msra.mxu0 %v1616
          %2044 = vmatpush.msra.mxu0 %v1608
          %2045 = vmatpush.msra.mxu0 %v1600
          %2046 = vmatmul.f32.gmra.mxu0 %v1996
          %v2047 = vpop.f32.mrf.mxu0
          %v2048 = vadd.f32 1e-06, %v2047
          %2049 = vdwg.mxu0
          %2050 = vmatpush.msra.mxu0 0.0
          %2051 = vmatpush.msra.mxu0 0.0
          %2052 = vmatpush.msra.mxu0 0.0
          %2053 = vmatpush.msra.mxu0 0.0
          %2054 = vmatpush.msra.mxu0 0.0
          %2055 = vmatpush.msra.mxu0 0.0
          %2056 = vmatpush.msra.mxu0 0.0
          %2057 = vmatpush.msra.mxu0 0.0
          %2058 = vmatpush.msra.mxu0 0.0
          %2059 = vmatpush.msra.mxu0 0.0
          %2060 = vmatpush.msra.mxu0 0.0
          %2061 = vmatpush.msra.mxu0 0.0
          %2062 = vmatpush.msra.mxu0 %v2005
          %2063 = vmatpush.msra.mxu0 %v1618
          %2064 = vmatpush.msra.mxu0 %v1610
          %2065 = vmatpush.msra.mxu0 %v1602
          %2066 = vmatmul.f32.gmra.mxu0 %v1996
          %v2067 = vpop.f32.mrf.mxu0
          %v2068 = vadd.f32 1e-06, %v2067
          %2069 = vdwg.mxu0
          %2070 = vmatpush.msra.mxu0 0.0
          %2071 = vmatpush.msra.mxu0 0.0
          %2072 = vmatpush.msra.mxu0 0.0
          %2073 = vmatpush.msra.mxu0 0.0
          %2074 = vmatpush.msra.mxu0 0.0
          %2075 = vmatpush.msra.mxu0 0.0
          %2076 = vmatpush.msra.mxu0 0.0
          %2077 = vmatpush.msra.mxu0 0.0
          %2078 = vmatpush.msra.mxu0 0.0
          %2079 = vmatpush.msra.mxu0 0.0
          %2080 = vmatpush.msra.mxu0 0.0
          %2081 = vmatpush.msra.mxu0 0.0
          %2082 = vmatpush.msra.mxu0 %v2008
          %2083 = vmatpush.msra.mxu0 %v1620
          %2084 = vmatpush.msra.mxu0 %v1612
          %2085 = vmatpush.msra.mxu0 %v1604
          %2086 = vmatmul.f32.gmra.mxu0 %v1996
          %v2087 = vpop.f32.mrf.mxu0
          %v2088 = vadd.f32 1e-06, %v2087
          %2089 = vdwg.mxu0
          %v2090 = vlog2.pop %v2028
          %v2091 = vmul.f32 %v2090, 0.6931472
          %v2092 = vlog2.pop %v2048
          %v2093 = vmul.f32 %v2092, 0.6931472
          %v2094 = vlog2.pop %v2068
          %v2095 = vmul.f32 %v2094, 0.6931472
          %v2096 = vlog2.pop %v2088
          %v2097 = vmul.f32 %v2096, 0.6931472
          %2098 = vst [vmem:[#allocation11] sm:$0xff] %v2091
          %2099 = vst [vmem:[#allocation11 + $0x8] sm:$0xff] %v2093
          %2100 = vst [vmem:[#allocation11 + $0x10] sm:$0xff] %v2095
          %2101 = vst [vmem:[#allocation11 + $0x18] sm:$0xff] %v2097
          %v2102 = vld [vmem:[#allocation9] sm:$0xff]
          %v2103 = vld [vmem:[#allocation9 + $0x8] sm:$0xff]
          %v2104 = vld [vmem:[#allocation9 + $0x10] sm:$0xff]
          %v2105 = vld [vmem:[#allocation9 + $0x18] sm:$0xff]
          %v2106 = vmul.f32 %v2091, %v2102
          %v2107 = vmul.f32 %v2093, %v2103
          %v2108 = vmul.f32 %v2095, %v2104
          %v2109 = vmul.f32 %v2097, %v2105
          %v2110 = vadd.f32 %v2106, %v2107
          %v2111 = vadd.f32 %v2110, %v2108
          %v2112 = vadd.f32 %v2111, %v2109
          %2113 = vadd.xlane.f32.xlu0 %v2112
          %v2114 = vpop.xlane.xlu0 %2113
          %v2115 = vadd.f32 %v2114, 0.0
          %v2117 = vsel %vm1436, %v1670, 0
          %v2120 = vsel %vm1436, %v1672, 0
          %v2123 = vsel %vm1436, %v1674, 0
          %v2126 = vsel %vm1436, %v1676, 0
          %2128 = vmatpush.msra.mxu0 0.0
          %2129 = vmatpush.msra.mxu0 0.0
          %2130 = vmatpush.msra.mxu0 0.0
          %2131 = vmatpush.msra.mxu0 0.0
          %2132 = vmatpush.msra.mxu0 0.0
          %2133 = vmatpush.msra.mxu0 0.0
          %2134 = vmatpush.msra.mxu0 0.0
          %2135 = vmatpush.msra.mxu0 0.0
          %2136 = vmatpush.msra.mxu0 0.0
          %2137 = vmatpush.msra.mxu0 0.0
          %2138 = vmatpush.msra.mxu0 0.0
          %2139 = vmatpush.msra.mxu0 0.0
          %2140 = vmatpush.msra.mxu0 %v2117
          %2141 = vmatpush.msra.mxu0 %v1662
          %2142 = vmatpush.msra.mxu0 %v1654
          %2143 = vmatpush.msra.mxu0 %v1646
          %2144 = vmatmul.f32.gmra.mxu0 %v1996
          %v2145 = vpop.f32.mrf.mxu0
          %v2146 = vadd.f32 1e-06, %v2145
          %2147 = vdwg.mxu0
          %2148 = vmatpush.msra.mxu0 0.0
          %2149 = vmatpush.msra.mxu0 0.0
          %2150 = vmatpush.msra.mxu0 0.0
          %2151 = vmatpush.msra.mxu0 0.0
          %2152 = vmatpush.msra.mxu0 0.0
          %2153 = vmatpush.msra.mxu0 0.0
          %2154 = vmatpush.msra.mxu0 0.0
          %2155 = vmatpush.msra.mxu0 0.0
          %2156 = vmatpush.msra.mxu0 0.0
          %2157 = vmatpush.msra.mxu0 0.0
          %2158 = vmatpush.msra.mxu0 0.0
          %2159 = vmatpush.msra.mxu0 0.0
          %2160 = vmatpush.msra.mxu0 %v2120
          %2161 = vmatpush.msra.mxu0 %v1664
          %2162 = vmatpush.msra.mxu0 %v1656
          %2163 = vmatpush.msra.mxu0 %v1648
          %2164 = vmatmul.f32.gmra.mxu0 %v1996
          %v2165 = vpop.f32.mrf.mxu0
          %v2166 = vadd.f32 1e-06, %v2165
          %2167 = vdwg.mxu0
          %2168 = vmatpush.msra.mxu0 0.0
          %2169 = vmatpush.msra.mxu0 0.0
          %2170 = vmatpush.msra.mxu0 0.0
          %2171 = vmatpush.msra.mxu0 0.0
          %2172 = vmatpush.msra.mxu0 0.0
          %2173 = vmatpush.msra.mxu0 0.0
          %2174 = vmatpush.msra.mxu0 0.0
          %2175 = vmatpush.msra.mxu0 0.0
          %2176 = vmatpush.msra.mxu0 0.0
          %2177 = vmatpush.msra.mxu0 0.0
          %2178 = vmatpush.msra.mxu0 0.0
          %2179 = vmatpush.msra.mxu0 0.0
          %2180 = vmatpush.msra.mxu0 %v2123
          %2181 = vmatpush.msra.mxu0 %v1666
          %2182 = vmatpush.msra.mxu0 %v1658
          %2183 = vmatpush.msra.mxu0 %v1650
          %2184 = vmatmul.f32.gmra.mxu0 %v1996
          %v2185 = vpop.f32.mrf.mxu0
          %v2186 = vadd.f32 1e-06, %v2185
          %2187 = vdwg.mxu0
          %2188 = vmatpush.msra.mxu0 0.0
          %2189 = vmatpush.msra.mxu0 0.0
          %2190 = vmatpush.msra.mxu0 0.0
          %2191 = vmatpush.msra.mxu0 0.0
          %2192 = vmatpush.msra.mxu0 0.0
          %2193 = vmatpush.msra.mxu0 0.0
          %2194 = vmatpush.msra.mxu0 0.0
          %2195 = vmatpush.msra.mxu0 0.0
          %2196 = vmatpush.msra.mxu0 0.0
          %2197 = vmatpush.msra.mxu0 0.0
          %2198 = vmatpush.msra.mxu0 0.0
          %2199 = vmatpush.msra.mxu0 0.0
          %2200 = vmatpush.msra.mxu0 %v2126
          %2201 = vmatpush.msra.mxu0 %v1668
          %2202 = vmatpush.msra.mxu0 %v1660
          %2203 = vmatpush.msra.mxu0 %v1652
          %2204 = vmatmul.f32.gmra.mxu0 %v1996
          %v2205 = vpop.f32.mrf.mxu0
          %v2206 = vadd.f32 1e-06, %v2205
          %2207 = vdwg.mxu0
          %v2208 = vlog2.pop %v2146
          %v2209 = vmul.f32 %v2208, 0.6931472
          %v2210 = vlog2.pop %v2166
          %v2211 = vmul.f32 %v2210, 0.6931472
          %v2212 = vlog2.pop %v2186
          %v2213 = vmul.f32 %v2212, 0.6931472
          %v2214 = vlog2.pop %v2206
          %v2215 = vmul.f32 %v2214, 0.6931472
          %2216 = vst [vmem:[#allocation11 + $0x20] sm:$0xff] %v2209
          %2217 = vst [vmem:[#allocation11 + $0x28] sm:$0xff] %v2211
          %2218 = vst [vmem:[#allocation11 + $0x30] sm:$0xff] %v2213
          %2219 = vst [vmem:[#allocation11 + $0x38] sm:$0xff] %v2215
          %v2220 = vld [vmem:[#allocation9 + $0x20] sm:$0xff]
          %v2221 = vld [vmem:[#allocation9 + $0x28] sm:$0xff]
          %v2222 = vld [vmem:[#allocation9 + $0x30] sm:$0xff]
          %v2223 = vld [vmem:[#allocation9 + $0x38] sm:$0xff]
          %v2224 = vmul.f32 %v2209, %v2220
          %v2225 = vmul.f32 %v2211, %v2221
          %v2226 = vmul.f32 %v2213, %v2222
          %v2227 = vmul.f32 %v2215, %v2223
          %v2228 = vadd.f32 %v2224, %v2225
          %v2229 = vadd.f32 %v2228, %v2226
          %v2230 = vadd.f32 %v2229, %v2227
          %2231 = vadd.xlane.f32.xlu0 %v2230
          %v2232 = vpop.xlane.xlu0 %2231
          %v2233 = vadd.f32 %v2115, %v2232
          %v2235 = vsel %vm1436, %v1718, 0
          %v2238 = vsel %vm1436, %v1720, 0
          %v2241 = vsel %vm1436, %v1722, 0
          %v2244 = vsel %vm1436, %v1724, 0
          %2246 = vmatpush.msra.mxu0 0.0
          %2247 = vmatpush.msra.mxu0 0.0
          %2248 = vmatpush.msra.mxu0 0.0
          %2249 = vmatpush.msra.mxu0 0.0
          %2250 = vmatpush.msra.mxu0 0.0
          %2251 = vmatpush.msra.mxu0 0.0
          %2252 = vmatpush.msra.mxu0 0.0
          %2253 = vmatpush.msra.mxu0 0.0
          %2254 = vmatpush.msra.mxu0 0.0
          %2255 = vmatpush.msra.mxu0 0.0
          %2256 = vmatpush.msra.mxu0 0.0
          %2257 = vmatpush.msra.mxu0 0.0
          %2258 = vmatpush.msra.mxu0 %v2235
          %2259 = vmatpush.msra.mxu0 %v1710
          %2260 = vmatpush.msra.mxu0 %v1702
          %2261 = vmatpush.msra.mxu0 %v1694
          %2262 = vmatmul.f32.gmra.mxu0 %v1996
          %v2263 = vpop.f32.mrf.mxu0
          %v2264 = vadd.f32 1e-06, %v2263
          %2265 = vdwg.mxu0
          %2266 = vmatpush.msra.mxu0 0.0
          %2267 = vmatpush.msra.mxu0 0.0
          %2268 = vmatpush.msra.mxu0 0.0
          %2269 = vmatpush.msra.mxu0 0.0
          %2270 = vmatpush.msra.mxu0 0.0
          %2271 = vmatpush.msra.mxu0 0.0
          %2272 = vmatpush.msra.mxu0 0.0
          %2273 = vmatpush.msra.mxu0 0.0
          %2274 = vmatpush.msra.mxu0 0.0
          %2275 = vmatpush.msra.mxu0 0.0
          %2276 = vmatpush.msra.mxu0 0.0
          %2277 = vmatpush.msra.mxu0 0.0
          %2278 = vmatpush.msra.mxu0 %v2238
          %2279 = vmatpush.msra.mxu0 %v1712
          %2280 = vmatpush.msra.mxu0 %v1704
          %2281 = vmatpush.msra.mxu0 %v1696
          %2282 = vmatmul.f32.gmra.mxu0 %v1996
          %v2283 = vpop.f32.mrf.mxu0
          %v2284 = vadd.f32 1e-06, %v2283
          %2285 = vdwg.mxu0
          %2286 = vmatpush.msra.mxu0 0.0
          %2287 = vmatpush.msra.mxu0 0.0
          %2288 = vmatpush.msra.mxu0 0.0
          %2289 = vmatpush.msra.mxu0 0.0
          %2290 = vmatpush.msra.mxu0 0.0
          %2291 = vmatpush.msra.mxu0 0.0
          %2292 = vmatpush.msra.mxu0 0.0
          %2293 = vmatpush.msra.mxu0 0.0
          %2294 = vmatpush.msra.mxu0 0.0
          %2295 = vmatpush.msra.mxu0 0.0
          %2296 = vmatpush.msra.mxu0 0.0
          %2297 = vmatpush.msra.mxu0 0.0
          %2298 = vmatpush.msra.mxu0 %v2241
          %2299 = vmatpush.msra.mxu0 %v1714
          %2300 = vmatpush.msra.mxu0 %v1706
          %2301 = vmatpush.msra.mxu0 %v1698
          %2302 = vmatmul.f32.gmra.mxu0 %v1996
          %v2303 = vpop.f32.mrf.mxu0
          %v2304 = vadd.f32 1e-06, %v2303
          %2305 = vdwg.mxu0
          %2306 = vmatpush.msra.mxu0 0.0
          %2307 = vmatpush.msra.mxu0 0.0
          %2308 = vmatpush.msra.mxu0 0.0
          %2309 = vmatpush.msra.mxu0 0.0
          %2310 = vmatpush.msra.mxu0 0.0
          %2311 = vmatpush.msra.mxu0 0.0
          %2312 = vmatpush.msra.mxu0 0.0
          %2313 = vmatpush.msra.mxu0 0.0
          %2314 = vmatpush.msra.mxu0 0.0
          %2315 = vmatpush.msra.mxu0 0.0
          %2316 = vmatpush.msra.mxu0 0.0
          %2317 = vmatpush.msra.mxu0 0.0
          %2318 = vmatpush.msra.mxu0 %v2244
          %2319 = vmatpush.msra.mxu0 %v1716
          %2320 = vmatpush.msra.mxu0 %v1708
          %2321 = vmatpush.msra.mxu0 %v1700
          %2322 = vmatmul.f32.gmra.mxu0 %v1996
          %v2323 = vpop.f32.mrf.mxu0
          %v2324 = vadd.f32 1e-06, %v2323
          %2325 = vdwg.mxu0
          %v2326 = vlog2.pop %v2264
          %v2327 = vmul.f32 %v2326, 0.6931472
          %v2328 = vlog2.pop %v2284
          %v2329 = vmul.f32 %v2328, 0.6931472
          %v2330 = vlog2.pop %v2304
          %v2331 = vmul.f32 %v2330, 0.6931472
          %v2332 = vlog2.pop %v2324
          %v2333 = vmul.f32 %v2332, 0.6931472
          %2334 = vst [vmem:[#allocation11 + $0x40] sm:$0xff] %v2327
          %2335 = vst [vmem:[#allocation11 + $0x48] sm:$0xff] %v2329
          %2336 = vst [vmem:[#allocation11 + $0x50] sm:$0xff] %v2331
          %2337 = vst [vmem:[#allocation11 + $0x58] sm:$0xff] %v2333
          %v2338 = vld [vmem:[#allocation9 + $0x40] sm:$0xff]
          %v2339 = vld [vmem:[#allocation9 + $0x48] sm:$0xff]
          %v2340 = vld [vmem:[#allocation9 + $0x50] sm:$0xff]
          %v2341 = vld [vmem:[#allocation9 + $0x58] sm:$0xff]
          %v2342 = vmul.f32 %v2327, %v2338
          %v2343 = vmul.f32 %v2329, %v2339
          %v2344 = vmul.f32 %v2331, %v2340
          %v2345 = vmul.f32 %v2333, %v2341
          %v2346 = vadd.f32 %v2342, %v2343
          %v2347 = vadd.f32 %v2346, %v2344
          %v2348 = vadd.f32 %v2347, %v2345
          %2349 = vadd.xlane.f32.xlu0 %v2348
          %v2350 = vpop.xlane.xlu0 %2349
          %v2351 = vadd.f32 %v2233, %v2350
          %v2353 = vsel %vm1436, %v1794, 0
          %v2356 = vsel %vm1436, %v1795, 0
          %v2359 = vsel %vm1436, %v1796, 0
          %v2362 = vsel %vm1436, %v1797, 0
          %2364 = vmatpush.msra.mxu0 0.0
          %2365 = vmatpush.msra.mxu0 0.0
          %2366 = vmatpush.msra.mxu0 0.0
          %2367 = vmatpush.msra.mxu0 0.0
          %2368 = vmatpush.msra.mxu0 0.0
          %2369 = vmatpush.msra.mxu0 0.0
          %2370 = vmatpush.msra.mxu0 0.0
          %2371 = vmatpush.msra.mxu0 0.0
          %2372 = vmatpush.msra.mxu0 0.0
          %2373 = vmatpush.msra.mxu0 0.0
          %2374 = vmatpush.msra.mxu0 0.0
          %2375 = vmatpush.msra.mxu0 0.0
          %2376 = vmatpush.msra.mxu0 %v2353
          %2377 = vmatpush.msra.mxu0 %v1790
          %2378 = vmatpush.msra.mxu0 %v1786
          %2379 = vmatpush.msra.mxu0 %v1782
          %2380 = vmatmul.f32.gmra.mxu0 %v1996
          %v2381 = vpop.f32.mrf.mxu0
          %v2382 = vadd.f32 1e-06, %v2381
          %2383 = vdwg.mxu0
          %2384 = vmatpush.msra.mxu0 0.0
          %2385 = vmatpush.msra.mxu0 0.0
          %2386 = vmatpush.msra.mxu0 0.0
          %2387 = vmatpush.msra.mxu0 0.0
          %2388 = vmatpush.msra.mxu0 0.0
          %2389 = vmatpush.msra.mxu0 0.0
          %2390 = vmatpush.msra.mxu0 0.0
          %2391 = vmatpush.msra.mxu0 0.0
          %2392 = vmatpush.msra.mxu0 0.0
          %2393 = vmatpush.msra.mxu0 0.0
          %2394 = vmatpush.msra.mxu0 0.0
          %2395 = vmatpush.msra.mxu0 0.0
          %2396 = vmatpush.msra.mxu0 %v2356
          %2397 = vmatpush.msra.mxu0 %v1791
          %2398 = vmatpush.msra.mxu0 %v1787
          %2399 = vmatpush.msra.mxu0 %v1783
          %2400 = vmatmul.f32.gmra.mxu0 %v1996
          %v2401 = vpop.f32.mrf.mxu0
          %v2402 = vadd.f32 1e-06, %v2401
          %2403 = vdwg.mxu0
          %2404 = vmatpush.msra.mxu0 0.0
          %2405 = vmatpush.msra.mxu0 0.0
          %2406 = vmatpush.msra.mxu0 0.0
          %2407 = vmatpush.msra.mxu0 0.0
          %2408 = vmatpush.msra.mxu0 0.0
          %2409 = vmatpush.msra.mxu0 0.0
          %2410 = vmatpush.msra.mxu0 0.0
          %2411 = vmatpush.msra.mxu0 0.0
          %2412 = vmatpush.msra.mxu0 0.0
          %2413 = vmatpush.msra.mxu0 0.0
          %2414 = vmatpush.msra.mxu0 0.0
          %2415 = vmatpush.msra.mxu0 0.0
          %2416 = vmatpush.msra.mxu0 %v2359
          %2417 = vmatpush.msra.mxu0 %v1792
          %2418 = vmatpush.msra.mxu0 %v1788
          %2419 = vmatpush.msra.mxu0 %v1784
          %2420 = vmatmul.f32.gmra.mxu0 %v1996
          %v2421 = vpop.f32.mrf.mxu0
          %v2422 = vadd.f32 1e-06, %v2421
          %2423 = vdwg.mxu0
          %2424 = vmatpush.msra.mxu0 0.0
          %2425 = vmatpush.msra.mxu0 0.0
          %2426 = vmatpush.msra.mxu0 0.0
          %2427 = vmatpush.msra.mxu0 0.0
          %2428 = vmatpush.msra.mxu0 0.0
          %2429 = vmatpush.msra.mxu0 0.0
          %2430 = vmatpush.msra.mxu0 0.0
          %2431 = vmatpush.msra.mxu0 0.0
          %2432 = vmatpush.msra.mxu0 0.0
          %2433 = vmatpush.msra.mxu0 0.0
          %2434 = vmatpush.msra.mxu0 0.0
          %2435 = vmatpush.msra.mxu0 0.0
          %2436 = vmatpush.msra.mxu0 %v2362
          %2437 = vmatpush.msra.mxu0 %v1793
          %2438 = vmatpush.msra.mxu0 %v1789
          %2439 = vmatpush.msra.mxu0 %v1785
          %2440 = vmatmul.f32.gmra.mxu0 %v1996
          %v2441 = vpop.f32.mrf.mxu0
          %v2442 = vadd.f32 1e-06, %v2441
          %2443 = vdwg.mxu0
          %v2444 = vlog2.pop %v2382
          %v2445 = vmul.f32 %v2444, 0.6931472
          %v2446 = vlog2.pop %v2402
          %v2447 = vmul.f32 %v2446, 0.6931472
          %v2448 = vlog2.pop %v2422
          %v2449 = vmul.f32 %v2448, 0.6931472
          %v2450 = vlog2.pop %v2442
          %v2451 = vmul.f32 %v2450, 0.6931472
          %2452 = vst [vmem:[#allocation11 + $0x60] sm:$0xff] %v2445
          %2453 = vst [vmem:[#allocation11 + $0x68] sm:$0xff] %v2447
          %2454 = vst [vmem:[#allocation11 + $0x70] sm:$0xff] %v2449
          %2455 = vst [vmem:[#allocation11 + $0x78] sm:$0xff] %v2451
          %v2456 = vld [vmem:[#allocation9 + $0x60] sm:$0xff]
          %v2457 = vmul.f32 %v2445, %v2456
          %vm2458 = vcmask 613376
          %v2459 = vsel %vm2458, %v2457, 0.0
          %2460 = vadd.xlane.f32.xlu0 %v2459
          %v2461 = vpop.xlane.xlu0 %2460
          %v2462 = vadd.f32 %v2351, %v2461
          %v2463 = vsub.f32 0.0, %v2462
          %vm2464 = vcmask 7168
          %2465 = vst.msk [vmem:[%s5] sm:$0xff] %vm2464, %v2463
        $region56: #{tpu_custom_call.1} parent=35 // pred_fallthru
          _
        // Predicated region
        $region57: #{tpu_custom_call.1} parent=35 // pred_check
          %p2466 = pneg %p125
        $region58: #{tpu_custom_call.1} parent=35 // pred_check_branch
          %2468 = sbr.rel (%p2466) target = $region60
        $region59: #{tpu_custom_call.1} parent=35 // pred_region
          %2470 = vsyncadd [#allocation5], 0
          %s2472 = sshll.u32 [#allocation11], 4
          %s2473 = int_to_ptr.vmem [resolvable:$true] %s2472
          %s2474 = sshll.u32 %s4, 4
          %s2475 = int_to_ptr.hbm [resolvable:$true] %s2474
          %2477 = dma.vmem_to_hbm [thread:$0]  %s2473, 2048, %s2475, [#allocation5]
        $region60: #{tpu_custom_call.1} parent=35 // pred_fallthru
          _
        // Predicated region
        $region61: #{tpu_custom_call.1} parent=35 // pred_check
          %p2478 = pneg %p146
        $region62: #{tpu_custom_call.1} parent=35 // pred_check_branch
          %2480 = sbr.rel (%p2478) target = $region64
        $region63: #{tpu_custom_call.1} parent=35 // pred_region
          _
        $region64: #{tpu_custom_call.1} parent=35 // pred_fallthru
          _
        // Predicated region
        $region65: #{tpu_custom_call.1} parent=35 // pred_check
          %p2481 = pneg %p125
        $region66: #{tpu_custom_call.1} parent=35 // pred_check_branch
          %2483 = sbr.rel (%p2481) target = $region68
        $region67: #{tpu_custom_call.1} parent=35 // pred_region
          %2485 = dma.done [#allocation5], 2048
        $region68: #{tpu_custom_call.1} parent=35 // pred_fallthru
          _
        // Predicated region
        $region69: #{tpu_custom_call.1} parent=35 // pred_check
          %p2486 = pneg %p146
        $region70: #{tpu_custom_call.1} parent=35 // pred_check_branch
          %2488 = sbr.rel (%p2486) target = $region72
        $region71: #{tpu_custom_call.1} parent=35 // pred_region
          _
        $region72: #{tpu_custom_call.1} parent=35 // pred_fallthru
          _
      $region36: #{tpu_custom_call.1} parent=5 // pred_fallthru
        _
      %p2489 = scmp.le.s32.totalorder 2, %s18
      // Predicated region
      $region73: #{tpu_custom_call.1} parent=5 // pred_check
        %p2490 = pneg %p2489
      $region74: #{tpu_custom_call.1} parent=5 // pred_check_branch
        %2492 = sbr.rel (%p2490) target = $region76
      $region75: #{tpu_custom_call.1} parent=5 // pred_region
        %s2493 = ssub.s32 %s18, 2
      $region76: #{tpu_custom_call.1} parent=5 // pred_fallthru
        _
    $region6: #{tpu_custom_call.1} parent=1 // loop_footer
      %s22 = sadd.s32 1, %s18
    $region7: #{tpu_custom_call.1} parent=1 // loop_footer_branch
      %17 = sbr.rel target = $region3
    $region8: #{tpu_custom_call.1} parent=1 // loop_exit
      _
    %2494 = vsyncpa [#allocation4], 1
    %s2495 = scalar_lea.sflag [#allocation4], 1
    %2496 = vsyncpa %s2495, 1
    %2497 = vsyncpa [#allocation7], 1
    %s2498 = scalar_lea.sflag [#allocation7], 1
    %2499 = vsyncpa %s2498, 1
    %2500 = vsyncpa [#allocation10], 1
    %2501 = vsyncpa [#allocation5], 1
    %s2502 = scalar_lea.sflag [#allocation5], 1
    %2503 = vsyncpa %s2502, 1

</llo_original>
